<compile_context>
chip_gen: v7x
topology: tpu7x:2x2x1
jax: 0.10.0
libtpu: 0.0.40
codegen_flags: <defaults>
</compile_context>

<pallas_src>
import functools

import numpy as np
import jax
import jax.numpy as jnp
from jax.experimental import pallas as pl
from jax.experimental.pallas import tpu as pltpu

F32 = jnp.float32
BF16 = jnp.bfloat16
BN_EPS = 1e-5

VMEM_LIMIT_BYTES = 48 * 1024 * 1024     # safe on v5e/v6e (128 MiB) and v7x (64 MiB)
DIRECT_VMEM_BUDGET = 36 * 1024 * 1024   # budget for the whole-image direct conv

_DIRECT_OK = None                       # set by _direct_conv_supported()


# ---------------------------------------------------------------------------
# Tiling helpers
# ---------------------------------------------------------------------------
def _round_up(x, m):
    return ((x + m - 1) // m) * m


def _pick_tile(dim, cap=512):
    """(padded dim, tile) for a lane-major dim: full extent if <= cap, else the
    largest of 512/384/256/128 dividing the 128-rounded dim."""
    if dim <= cap:
        return dim, dim
    p = _round_up(dim, 128)
    t = next(t for t in (512, 384, 256, 128) if t <= cap and p % t == 0)
    return p, t


# ---------------------------------------------------------------------------
# Fused matmul kernel: out = act(x @ w + shift [+ residual])
# (f32 VMEM scratch accumulator, bf16/f32 output written in the epilogue)
# ---------------------------------------------------------------------------
def _make_matmul_kernel(relu, has_shift, has_residual):
    def kernel(*refs):
        x_ref, w_ref = refs[0], refs[1]
        idx = 2
        b_ref = None
        if has_shift:
            b_ref = refs[idx]
            idx += 1
        r_ref = None
        if has_residual:
            r_ref = refs[idx]
            idx += 1
        o_ref, acc_ref = refs[idx], refs[idx + 1]

        k = pl.program_id(2)

        @pl.when(k == 0)
        def _():
            acc_ref[...] = jnp.zeros_like(acc_ref)

        acc_ref[...] += jnp.dot(x_ref[...], w_ref[...],
                                preferred_element_type=jnp.float32)

        @pl.when(k == pl.num_programs(2) - 1)
        def _():
            y = acc_ref[...]
            if has_shift:
                y = y + b_ref[...]
            if has_residual:
                y = y + r_ref[...].astype(jnp.float32)
            if relu:
                y = jnp.maximum(y, 0.0)
            o_ref[...] = y.astype(o_ref.dtype)

    return kernel


def _fused_matmul(x, w, shift, relu, residual=None, out_dtype=BF16,
                  cast_bf16=True):
    """act(x @ w + shift [+ residual]); shift broadcasts per output column."""
    M, K = x.shape
    Cout = w.shape[1]
    in_dtype = BF16 if cast_bf16 else x.dtype

    Kp, TK = _pick_tile(K, cap=512)
    Np, TN = _pick_tile(Cout, cap=512)

    # M uses a cdiv grid (no HBM row-padding copies); split M for small
    # matmuls so the parallel grid has at least 2 tiles (v7x has 2 TCs).
    TM = min(512, _round_up(M, 16))
    if pl.cdiv(M, TM) * (Np // TN) < 2 and M >= 32:
        TM = _round_up((M + 1) // 2, 16)

    xp = x.astype(in_dtype)
    wp = w.astype(in_dtype)
    if Kp != K:
        xp = jnp.pad(xp, ((0, 0), (0, Kp - K)))
        wp = jnp.pad(wp, ((0, Kp - K), (0, 0)))
    if Np != Cout:
        wp = jnp.pad(wp, ((0, 0), (0, Np - Cout)))

    in_specs = [pl.BlockSpec((TM, TK), lambda m, n, k: (m, k)),
                pl.BlockSpec((TK, TN), lambda m, n, k: (k, n))]
    args = [xp, wp]

    has_shift = shift is not None
    if has_shift:
        bp = shift.reshape(1, -1).astype(F32)
        if Np != Cout:
            bp = jnp.pad(bp, ((0, 0), (0, Np - Cout)))
        in_specs.append(pl.BlockSpec((1, TN), lambda m, n, k: (0, n)))
        args.append(bp)

    has_residual = residual is not None
    if has_residual:
        rp = residual.reshape(M, Cout).astype(BF16)   # stream residual as bf16
        if Np != Cout:
            rp = jnp.pad(rp, ((0, 0), (0, Np - Cout)))
        in_specs.append(pl.BlockSpec((TM, TN), lambda m, n, k: (m, n)))
        args.append(rp)

    out = pl.pallas_call(
        _make_matmul_kernel(relu, has_shift, has_residual),
        out_shape=jax.ShapeDtypeStruct((M, Np), out_dtype),
        grid_spec=pltpu.PrefetchScalarGridSpec(
            num_scalar_prefetch=0,
            grid=(pl.cdiv(M, TM), Np // TN, Kp // TK),
            in_specs=in_specs,
            out_specs=pl.BlockSpec((TM, TN), lambda m, n, k: (m, n)),
            scratch_shapes=[pltpu.VMEM((TM, TN), F32)],
        ),
        compiler_params=pltpu.CompilerParams(
            dimension_semantics=("parallel", "parallel", "arbitrary"),
            vmem_limit_bytes=VMEM_LIMIT_BYTES),
    )(*args)
    if Np != Cout:
        out = out[:, :Cout]
    return out


# ---------------------------------------------------------------------------
# Direct (no-im2col) 3x3 stride-1 conv: whole padded image resident in VMEM,
# 9 taps walked with shifted in-VMEM slices, bias + ReLU fused.
# ---------------------------------------------------------------------------
def _make_direct_conv_kernel(KH, KW, dil, OH, OW, relu):
    def kernel(x_ref, w_ref, b_ref, o_ref):
        # x_ref: (1, Hp, Wp, Cin) bf16     w_ref: (KH*KW, Cin, TCout) bf16
        # b_ref: (1, TCout) f32            o_ref: (1, OH, OW, TCout) bf16
        bias = b_ref[...]

        def row(h, carry):
            acc = jnp.zeros((OW, w_ref.shape[2]), jnp.float32)
            for t in range(KH * KW):
                i, j = divmod(t, KW)
                patch = x_ref[0, h + i * dil, pl.ds(j * dil, OW), :]
                acc = acc + jnp.dot(patch, w_ref[t],
                                    preferred_element_type=jnp.float32)
            y = acc + bias
            if relu:
                y = jnp.maximum(y, 0.0)
            o_ref[0, h] = y.astype(o_ref.dtype)
            return carry

        jax.lax.fori_loop(0, OH, row, 0)

    return kernel


def _conv3x3_direct(x, w, shift, *, dilation, relu):
    N, H, W, Cin = x.shape
    KH, KW, _, Cout = w.shape
    pad = dilation                           # "same" output (padding == dilation)
    OH, OW = H, W
    Hp, Wp = H + 2 * pad, W + 2 * pad
    n_co = 2 if Cout >= 256 else 1
    TCout = Cout // n_co

    xp = jnp.pad(x.astype(BF16), ((0, 0), (pad, pad), (pad, pad), (0, 0)))
    wr = w.reshape(KH * KW, Cin, Cout).astype(BF16)
    bp = shift.reshape(1, Cout).astype(F32)

    return pl.pallas_call(
        _make_direct_conv_kernel(KH, KW, dilation, OH, OW, relu),
        out_shape=jax.ShapeDtypeStruct((N, OH, OW, Cout), BF16),
        grid_spec=pltpu.PrefetchScalarGridSpec(
            num_scalar_prefetch=0,
            grid=(N, n_co),
            in_specs=[
                pl.BlockSpec((1, Hp, Wp, Cin), lambda n, c: (n, 0, 0, 0)),
                pl.BlockSpec((KH * KW, Cin, TCout), lambda n, c: (0, 0, c)),
                pl.BlockSpec((1, TCout), lambda n, c: (0, c)),
            ],
            out_specs=pl.BlockSpec((1, OH, OW, TCout), lambda n, c: (n, 0, 0, c)),
        ),
        compiler_params=pltpu.CompilerParams(
            dimension_semantics=("parallel", "parallel"),
            vmem_limit_bytes=VMEM_LIMIT_BYTES),
    )(xp, wr, bp)


def _direct_conv_fits(H, W, Cin, Cout, dilation):
    Hp, Wp = H + 2 * dilation, W + 2 * dilation
    tco = Cout // (2 if Cout >= 256 else 1)
    need = (2 * Hp * Wp * Cin * 2         # padded image (double-buffered, bf16)
            + 2 * 9 * Cin * tco * 2       # weight slab per Cout block
            + 2 * H * W * tco * 2         # output block (bf16)
            + (1 << 20))                  # margin
    return need <= DIRECT_VMEM_BUDGET


def _direct_conv_supported():
    """One-time probe: lower + numerically validate the direct-conv kernel
    (vs lax.conv); on any failure fall back to the im2col path."""
    global _DIRECT_OK
    if _DIRECT_OK is not None:
        return _DIRECT_OK
    try:
        key = jax.random.PRNGKey(123)
        x = jax.random.normal(key, (1, 6, 6, 128), F32).astype(BF16)
        w = 0.05 * jax.random.normal(jax.random.fold_in(key, 1),
                                     (3, 3, 128, 128), F32)
        b = 0.1 * jax.random.normal(jax.random.fold_in(key, 2), (128,), F32)
        got = np.asarray(_conv3x3_direct(x, w, b, dilation=2, relu=True),
                         np.float32)
        ref = jax.lax.conv_general_dilated(
            x.astype(F32), w, window_strides=(1, 1),
            padding=((2, 2), (2, 2)), rhs_dilation=(2, 2),
            dimension_numbers=("NHWC", "HWIO", "NHWC"))
        ref = np.maximum(np.asarray(ref, np.float32) + np.asarray(b), 0.0)
        _DIRECT_OK = bool(np.allclose(got, ref, rtol=5e-2, atol=5e-2))
    except Exception:
        _DIRECT_OK = False
    return _DIRECT_OK


# ---------------------------------------------------------------------------
# Conv wrapper (direct path / 1x1 matmul path / im2col fallback)
# ---------------------------------------------------------------------------
@functools.partial(jax.jit, static_argnames=("stride", "dilation", "padding",
                                              "relu", "out_f32"))
def conv2d_fused(x, w, shift, *, stride=1, dilation=1, padding=0, relu=False,
                 residual=None, out_f32=False):
    N, H, W, Cin = x.shape
    KH, KW, _, Cout = w.shape
    out_dtype = F32 if out_f32 else BF16

    if (_DIRECT_OK and KH == 3 and KW == 3 and stride == 1
            and padding == dilation and residual is None and not out_f32
            and _direct_conv_fits(H, W, Cin, Cout, dilation)):
        return _conv3x3_direct(x, w, shift, dilation=dilation, relu=relu)

    OH = (H + 2 * padding - dilation * (KH - 1) - 1) // stride + 1
    OW = (W + 2 * padding - dilation * (KW - 1) - 1) // stride + 1
    xp = x.astype(BF16)
    if padding:
        xp = jnp.pad(xp, ((0, 0), (padding, padding), (padding, padding), (0, 0)))
    if KH == 1 and KW == 1:
        patches = xp[:, ::stride, ::stride, :].reshape(N * OH * OW, Cin)
    else:
        # TODO(synk): the remaining im2col users (7x7 stride-2 stem, the single
        # stride-2 3x3, and 3x3 convs too large for whole-image VMEM residency)
        # still materialize a KH*KW-duplicated bf16 patch matrix in HBM.
        cols = []
        for i in range(KH):
            for j in range(KW):
                hs, ws = i * dilation, j * dilation
                cols.append(xp[:, hs:hs + (OH - 1) * stride + 1:stride,
                               ws:ws + (OW - 1) * stride + 1:stride, :])
        patches = jnp.concatenate(cols, axis=-1).reshape(
            N * OH * OW, KH * KW * Cin)
    wmat = w.reshape(KH * KW * Cin, Cout)
    res = None if residual is None else residual.reshape(N * OH * OW, Cout)
    out = _fused_matmul(patches, wmat, shift, relu, residual=res,
                        out_dtype=out_dtype)
    return out.reshape(N, OH, OW, Cout)


# ---------------------------------------------------------------------------
# MaxPool 3x3 stride 2 pad 1 (separable: H-max then W-max, lane-dense kernel)
# ---------------------------------------------------------------------------
def _max3_kernel(a_ref, b_ref, c_ref, o_ref):
    o_ref[...] = jnp.maximum(jnp.maximum(a_ref[...], b_ref[...]), c_ref[...])


def _max_of_3(a, b, c):
    shape, dt = a.shape, a.dtype
    T = int(np.prod(shape))
    L = 512
    Tp = _round_up(T, L * 8)

    def flat(v):
        v = v.reshape(-1)
        if Tp != T:
            v = jnp.pad(v, (0, Tp - T))
        return v.reshape(Tp // L, L)

    af, bf, cf = flat(a), flat(b), flat(c)
    R = Tp // L
    TR = min(256, R)
    out = pl.pallas_call(
        _max3_kernel,
        out_shape=jax.ShapeDtypeStruct((R, L), dt),
        grid_spec=pltpu.PrefetchScalarGridSpec(
            num_scalar_prefetch=0,
            grid=(pl.cdiv(R, TR),),
            in_specs=[pl.BlockSpec((TR, L), lambda r: (r, 0))] * 3,
            out_specs=pl.BlockSpec((TR, L), lambda r: (r, 0)),
        ),
        compiler_params=pltpu.CompilerParams(
            dimension_semantics=("parallel",)),
    )(af, bf, cf)
    return out.reshape(-1)[:T].reshape(shape)


@jax.jit
def maxpool_3x3_s2_p1(x):
    N, H, W, C = x.shape
    OH = (H + 2 - 3) // 2 + 1
    OW = (W + 2 - 3) // 2 + 1
    xp = jnp.pad(x, ((0, 0), (1, 1), (1, 1), (0, 0)),
                 constant_values=-jnp.inf)
    rows = [xp[:, i:i + 2 * (OH - 1) + 1:2, :, :] for i in range(3)]
    h = _max_of_3(*rows)                                # (N, OH, W+2, C)
    cols = [h[:, :, j:j + 2 * (OW - 1) + 1:2, :] for j in range(3)]
    return _max_of_3(*cols)                             # (N, OH, OW, C)


# ---------------------------------------------------------------------------
# Bilinear upsample (align_corners=False), separable H/W matmul passes
# ---------------------------------------------------------------------------
def _bilinear_matrix(out_size, in_size):
    R = np.zeros((out_size, in_size), np.float32)
    scale = in_size / out_size
    for o in range(out_size):
        src = max((o + 0.5) * scale - 0.5, 0.0)
        i0 = min(int(np.floor(src)), in_size - 1)
        i1 = min(i0 + 1, in_size - 1)
        w1 = src - i0
        R[o, i0] += 1.0 - w1
        R[o, i1] += w1
    return R


@functools.partial(jax.jit, static_argnames=("out_h", "out_w"))
def upsample_bilinear(x, out_h, out_w):
    N, IH, IW, C = x.shape
    Rh = jnp.asarray(_bilinear_matrix(out_h, IH))       # (OH, IH)
    Rw = jnp.asarray(_bilinear_matrix(out_w, IW))       # (OW, IW)
    xh = jnp.transpose(x, (1, 0, 2, 3)).reshape(IH, N * IW * C).astype(F32)
    yh = _fused_matmul(Rh, xh, None, False, out_dtype=F32, cast_bf16=False)
    yh = yh.reshape(out_h, N, IW, C).transpose(1, 0, 2, 3)      # (N, OH, IW, C)
    xw = jnp.transpose(yh, (2, 0, 1, 3)).reshape(IW, N * out_h * C)
    yw = _fused_matmul(Rw, xw, None, False, out_dtype=F32, cast_bf16=False)
    return yw.reshape(out_w, N, out_h, C).transpose(1, 2, 0, 3)  # (N,OH,OW,C)


# ---------------------------------------------------------------------------
# Deterministic parameter initialization (synthetic; no checkpoint loading)
# ---------------------------------------------------------------------------
class KeyGen:
    def __init__(self, seed):
        self.key = jax.random.PRNGKey(seed)
        self.i = 0

    def __call__(self):
        self.i += 1
        return jax.random.fold_in(self.key, self.i)


def init_conv_bn(kg, kh, kw, cin, cout):
    fan_in = kh * kw * cin
    w = (0.5 / np.sqrt(fan_in)) * jax.random.normal(kg(), (kh, kw, cin, cout), F32)
    # Eval-mode BN (gamma=1, beta=0, mean=0, var=1) folded into the weights.
    s = 1.0 / np.sqrt(1.0 + BN_EPS)
    return {"w": w * s, "shift": jnp.zeros((cout,), F32)}


def init_conv_bias(kg, kh, kw, cin, cout):
    fan_in = kh * kw * cin
    w = (0.5 / np.sqrt(fan_in)) * jax.random.normal(kg(), (kh, kw, cin, cout), F32)
    b = 0.01 * jax.random.normal(kg(), (cout,), F32)
    return {"w": w, "shift": b}


def init_fcn_resnet101_params(seed=0):
    kg = KeyGen(seed)
    params = {"conv1": init_conv_bn(kg, 7, 7, 3, 64)}
    # (planes, blocks, stride, dilation_first, dilation_rest);
    # replace_stride_with_dilation = [False, True, True]  (output stride 8)
    layer_cfg = [(64, 3, 1, 1, 1),
                 (128, 4, 2, 1, 1),
                 (256, 23, 1, 1, 2),
                 (512, 3, 1, 2, 4)]
    inplanes = 64
    layers = []
    for planes, blocks, stride, dil_first, dil_rest in layer_cfg:
        blks = []
        for b in range(blocks):
            cin = inplanes if b == 0 else planes * 4
            blk = {
                "conv1": init_conv_bn(kg, 1, 1, cin, planes),
                "conv2": init_conv_bn(kg, 3, 3, planes, planes),
                "conv3": init_conv_bn(kg, 1, 1, planes, planes * 4),
                "stride": stride if b == 0 else 1,
                "dilation": dil_first if b == 0 else dil_rest,
            }
            if b == 0 and (stride != 1 or inplanes != planes * 4):
                blk["downsample"] = init_conv_bn(kg, 1, 1, inplanes, planes * 4)
            blks.append(blk)
        layers.append(blks)
        inplanes = planes * 4
    params["layers"] = layers
    # FCNHead: Conv3x3(2048->512, no bias)+BN+ReLU+Dropout, then the replaced
    # classifier[4] = Conv2d(512, 2, kernel_size=1) with bias.
    params["head_conv"] = init_conv_bn(kg, 3, 3, 2048, 512)
    params["head_cls"] = init_conv_bias(kg, 1, 1, 512, 2)
    return params


# ---------------------------------------------------------------------------
# Forward pass
# ---------------------------------------------------------------------------
def bottleneck_forward(x, blk):
    s, d = blk["stride"], blk["dilation"]
    out = conv2d_fused(x, blk["conv1"]["w"], blk["conv1"]["shift"], relu=True)
    out = conv2d_fused(out, blk["conv2"]["w"], blk["conv2"]["shift"],
                       stride=s, dilation=d, padding=d, relu=True)
    if "downsample" in blk:
        identity = conv2d_fused(x, blk["downsample"]["w"],
                                blk["downsample"]["shift"],
                                stride=s, relu=False)
    else:
        identity = x
    # residual add + ReLU fused into conv3's matmul epilogue.
    return conv2d_fused(out, blk["conv3"]["w"], blk["conv3"]["shift"],
                        relu=True, residual=identity)


def fcn_res101_forward(params, x_nchw):
    _direct_conv_supported()                              # probe once (Python level)
    N, C, H, W = x_nchw.shape
    x = jnp.transpose(x_nchw, (0, 2, 3, 1)).astype(BF16)  # NCHW -> NHWC, bf16
    p = params["conv1"]
    x = conv2d_fused(x, p["w"], p["shift"], stride=2, padding=3, relu=True)
    x = maxpool_3x3_s2_p1(x)
    for blks in params["layers"]:
        for blk in blks:
            x = bottleneck_forward(x, blk)
    # FCN head (the aux classifier of the torchvision model does not affect 'out').
    p = params["head_conv"]
    x = conv2d_fused(x, p["w"], p["shift"], padding=1, relu=True)
    # TODO(synk): nn.Dropout(0.1) is stochastic in train mode; eval-mode identity used.
    p = params["head_cls"]
    x = conv2d_fused(x, p["w"], p["shift"], relu=False, out_f32=True)
    x = upsample_bilinear(x, H, W)                        # NHWC, 2 classes, f32
    return jnp.transpose(x, (0, 3, 1, 2)).astype(F32)     # NHWC -> NCHW


if __name__ == "__main__":
    params = init_fcn_resnet101_params(seed=0)
    x = jax.random.normal(jax.random.PRNGKey(0), (2, 3, 32, 32), F32)
    out = fcn_res101_forward(params, x)
    out = jax.block_until_ready(out)
    assert out.shape == (2, 2, 32, 32), out.shape
    assert bool(jnp.all(jnp.isfinite(out)))
    print("KERNEL_OK")
</pallas_src>

<mosaic_0001>
module attributes {stable_mosaic.version = 11 : i64} {
  func.func @kernel(%arg0: i32, %arg1: i32, %arg2: memref<1x10x10x128xbf16, #tpu.memory_space<vmem>>, %arg3: memref<9x128x128xbf16, #tpu.memory_space<vmem>>, %arg4: memref<1x128xf32, #tpu.memory_space<vmem>>, %arg5: memref<1x6x6x128xbf16, #tpu.memory_space<vmem>>) attributes {dimension_semantics = [#tpu.dimension_semantics<parallel>, #tpu.dimension_semantics<parallel>], iteration_bounds = array<i64: 1, 1>, scalar_prefetch = 0 : i64, scratch_operands = 0 : i64, tpu.core_type = #tpu.core_type<tc>, window_params = [{transform_indices = @transform_0, window_bounds = array<i64: 1, 10, 10, 128>}, {transform_indices = @transform_1, window_bounds = array<i64: 9, 128, 128>}, {transform_indices = @transform_2, window_bounds = array<i64: 1, 128>}, {transform_indices = @transform_3, window_bounds = array<i64: 1, 6, 6, 128>}]} {
    %c0 = arith.constant 0 : index
    %c0_0 = arith.constant 0 : index
    %0 = vector.load %arg4[%c0, %c0_0] : memref<1x128xf32, #tpu.memory_space<vmem>>, vector<1x128xf32>
    %c0_i32 = arith.constant 0 : i32
    %c6_i32 = arith.constant 6 : i32
    %1 = arith.addi %c0_i32, %c6_i32 : i32
    %c1_i32 = arith.constant 1 : i32
    scf.for %arg6 = %c0_i32 to %1 step %c1_i32  : i32 {
      %cst = arith.constant 0.000000e+00 : f32
      %2 = vector.broadcast %cst : f32 to vector<6x128xf32>
      %c0_i32_2 = arith.constant 0 : i32
      %3 = arith.addi %arg6, %c0_i32_2 : i32
      %c0_3 = arith.constant 0 : index
      %4 = arith.index_cast %3 : i32 to index
      %c0_4 = arith.constant 0 : index
      %c0_5 = arith.constant 0 : index
      %5 = vector.load %arg2[%c0_3, %4, %c0_4, %c0_5] : memref<1x10x10x128xbf16, #tpu.memory_space<vmem>>, vector<1x1x6x128xbf16>
      %6 = vector.shape_cast %5 : vector<1x1x6x128xbf16> to vector<6x128xbf16>
      %c0_6 = arith.constant 0 : index
      %c0_7 = arith.constant 0 : index
      %c0_8 = arith.constant 0 : index
      %7 = vector.load %arg3[%c0_6, %c0_7, %c0_8] : memref<9x128x128xbf16, #tpu.memory_space<vmem>>, vector<1x128x128xbf16>
      %8 = vector.shape_cast %7 : vector<1x128x128xbf16> to vector<128x128xbf16>
      %cst_9 = arith.constant dense<0.000000e+00> : vector<6x128xf32>
      %9 = tpu.matmul %6, %8, %cst_9 {dimension_numbers = #tpu.dot_dimension_numbers<[1], [0], [0], [1], [0, 0, 1, 1], [], []>} : vector<6x128xbf16>, vector<128x128xbf16>, vector<6x128xf32> -> vector<6x128xf32>
      %10 = arith.addf %2, %9 : vector<6x128xf32>
      %c0_i32_10 = arith.constant 0 : i32
      %11 = arith.addi %arg6, %c0_i32_10 : i32
      %c0_11 = arith.constant 0 : index
      %12 = arith.index_cast %11 : i32 to index
      %c2 = arith.constant 2 : index
      %c0_12 = arith.constant 0 : index
      %13 = vector.load %arg2[%c0_11, %12, %c2, %c0_12] : memref<1x10x10x128xbf16, #tpu.memory_space<vmem>>, vector<1x1x6x128xbf16>
      %14 = vector.shape_cast %13 : vector<1x1x6x128xbf16> to vector<6x128xbf16>
      %c1 = arith.constant 1 : index
      %c0_13 = arith.constant 0 : index
      %c0_14 = arith.constant 0 : index
      %15 = vector.load %arg3[%c1, %c0_13, %c0_14] : memref<9x128x128xbf16, #tpu.memory_space<vmem>>, vector<1x128x128xbf16>
      %16 = vector.shape_cast %15 : vector<1x128x128xbf16> to vector<128x128xbf16>
      %cst_15 = arith.constant dense<0.000000e+00> : vector<6x128xf32>
      %17 = tpu.matmul %14, %16, %cst_15 {dimension_numbers = #tpu.dot_dimension_numbers<[1], [0], [0], [1], [0, 0, 1, 1], [], []>} : vector<6x128xbf16>, vector<128x128xbf16>, vector<6x128xf32> -> vector<6x128xf32>
      %18 = arith.addf %10, %17 : vector<6x128xf32>
      %c0_i32_16 = arith.constant 0 : i32
      %19 = arith.addi %arg6, %c0_i32_16 : i32
      %c0_17 = arith.constant 0 : index
      %20 = arith.index_cast %19 : i32 to index
      %c4 = arith.constant 4 : index
      %c0_18 = arith.constant 0 : index
      %21 = vector.load %arg2[%c0_17, %20, %c4, %c0_18] : memref<1x10x10x128xbf16, #tpu.memory_space<vmem>>, vector<1x1x6x128xbf16>
      %22 = vector.shape_cast %21 : vector<1x1x6x128xbf16> to vector<6x128xbf16>
      %c2_19 = arith.constant 2 : index
      %c0_20 = arith.constant 0 : index
      %c0_21 = arith.constant 0 : index
      %23 = vector.load %arg3[%c2_19, %c0_20, %c0_21] : memref<9x128x128xbf16, #tpu.memory_space<vmem>>, vector<1x128x128xbf16>
      %24 = vector.shape_cast %23 : vector<1x128x128xbf16> to vector<128x128xbf16>
      %cst_22 = arith.constant dense<0.000000e+00> : vector<6x128xf32>
      %25 = tpu.matmul %22, %24, %cst_22 {dimension_numbers = #tpu.dot_dimension_numbers<[1], [0], [0], [1], [0, 0, 1, 1], [], []>} : vector<6x128xbf16>, vector<128x128xbf16>, vector<6x128xf32> -> vector<6x128xf32>
      %26 = arith.addf %18, %25 : vector<6x128xf32>
      %c2_i32 = arith.constant 2 : i32
      %27 = arith.addi %arg6, %c2_i32 : i32
      %c0_23 = arith.constant 0 : index
      %28 = arith.index_cast %27 : i32 to index
      %c0_24 = arith.constant 0 : index
      %c0_25 = arith.constant 0 : index
      %29 = vector.load %arg2[%c0_23, %28, %c0_24, %c0_25] : memref<1x10x10x128xbf16, #tpu.memory_space<vmem>>, vector<1x1x6x128xbf16>
      %30 = vector.shape_cast %29 : vector<1x1x6x128xbf16> to vector<6x128xbf16>
      %c3 = arith.constant 3 : index
      %c0_26 = arith.constant 0 : index
      %c0_27 = arith.constant 0 : index
      %31 = vector.load %arg3[%c3, %c0_26, %c0_27] : memref<9x128x128xbf16, #tpu.memory_space<vmem>>, vector<1x128x128xbf16>
      %32 = vector.shape_cast %31 : vector<1x128x128xbf16> to vector<128x128xbf16>
      %cst_28 = arith.constant dense<0.000000e+00> : vector<6x128xf32>
      %33 = tpu.matmul %30, %32, %cst_28 {dimension_numbers = #tpu.dot_dimension_numbers<[1], [0], [0], [1], [0, 0, 1, 1], [], []>} : vector<6x128xbf16>, vector<128x128xbf16>, vector<6x128xf32> -> vector<6x128xf32>
      %34 = arith.addf %26, %33 : vector<6x128xf32>
      %c2_i32_29 = arith.constant 2 : i32
      %35 = arith.addi %arg6, %c2_i32_29 : i32
      %c0_30 = arith.constant 0 : index
      %36 = arith.index_cast %35 : i32 to index
      %c2_31 = arith.constant 2 : index
      %c0_32 = arith.constant 0 : index
      %37 = vector.load %arg2[%c0_30, %36, %c2_31, %c0_32] : memref<1x10x10x128xbf16, #tpu.memory_space<vmem>>, vector<1x1x6x128xbf16>
      %38 = vector.shape_cast %37 : vector<1x1x6x128xbf16> to vector<6x128xbf16>
      %c4_33 = arith.constant 4 : index
      %c0_34 = arith.constant 0 : index
      %c0_35 = arith.constant 0 : index
      %39 = vector.load %arg3[%c4_33, %c0_34, %c0_35] : memref<9x128x128xbf16, #tpu.memory_space<vmem>>, vector<1x128x128xbf16>
      %40 = vector.shape_cast %39 : vector<1x128x128xbf16> to vector<128x128xbf16>
      %cst_36 = arith.constant dense<0.000000e+00> : vector<6x128xf32>
      %41 = tpu.matmul %38, %40, %cst_36 {dimension_numbers = #tpu.dot_dimension_numbers<[1], [0], [0], [1], [0, 0, 1, 1], [], []>} : vector<6x128xbf16>, vector<128x128xbf16>, vector<6x128xf32> -> vector<6x128xf32>
      %42 = arith.addf %34, %41 : vector<6x128xf32>
      %c2_i32_37 = arith.constant 2 : i32
      %43 = arith.addi %arg6, %c2_i32_37 : i32
      %c0_38 = arith.constant 0 : index
      %44 = arith.index_cast %43 : i32 to index
      %c4_39 = arith.constant 4 : index
      %c0_40 = arith.constant 0 : index
      %45 = vector.load %arg2[%c0_38, %44, %c4_39, %c0_40] : memref<1x10x10x128xbf16, #tpu.memory_space<vmem>>, vector<1x1x6x128xbf16>
      %46 = vector.shape_cast %45 : vector<1x1x6x128xbf16> to vector<6x128xbf16>
      %c5 = arith.constant 5 : index
      %c0_41 = arith.constant 0 : index
      %c0_42 = arith.constant 0 : index
      %47 = vector.load %arg3[%c5, %c0_41, %c0_42] : memref<9x128x128xbf16, #tpu.memory_space<vmem>>, vector<1x128x128xbf16>
      %48 = vector.shape_cast %47 : vector<1x128x128xbf16> to vector<128x128xbf16>
      %cst_43 = arith.constant dense<0.000000e+00> : vector<6x128xf32>
      %49 = tpu.matmul %46, %48, %cst_43 {dimension_numbers = #tpu.dot_dimension_numbers<[1], [0], [0], [1], [0, 0, 1, 1], [], []>} : vector<6x128xbf16>, vector<128x128xbf16>, vector<6x128xf32> -> vector<6x128xf32>
      %50 = arith.addf %42, %49 : vector<6x128xf32>
      %c4_i32 = arith.constant 4 : i32
      %51 = arith.addi %arg6, %c4_i32 : i32
      %c0_44 = arith.constant 0 : index
      %52 = arith.index_cast %51 : i32 to index
      %c0_45 = arith.constant 0 : index
      %c0_46 = arith.constant 0 : index
      %53 = vector.load %arg2[%c0_44, %52, %c0_45, %c0_46] : memref<1x10x10x128xbf16, #tpu.memory_space<vmem>>, vector<1x1x6x128xbf16>
      %54 = vector.shape_cast %53 : vector<1x1x6x128xbf16> to vector<6x128xbf16>
      %c6 = arith.constant 6 : index
      %c0_47 = arith.constant 0 : index
      %c0_48 = arith.constant 0 : index
      %55 = vector.load %arg3[%c6, %c0_47, %c0_48] : memref<9x128x128xbf16, #tpu.memory_space<vmem>>, vector<1x128x128xbf16>
      %56 = vector.shape_cast %55 : vector<1x128x128xbf16> to vector<128x128xbf16>
      %cst_49 = arith.constant dense<0.000000e+00> : vector<6x128xf32>
      %57 = tpu.matmul %54, %56, %cst_49 {dimension_numbers = #tpu.dot_dimension_numbers<[1], [0], [0], [1], [0, 0, 1, 1], [], []>} : vector<6x128xbf16>, vector<128x128xbf16>, vector<6x128xf32> -> vector<6x128xf32>
      %58 = arith.addf %50, %57 : vector<6x128xf32>
      %c4_i32_50 = arith.constant 4 : i32
      %59 = arith.addi %arg6, %c4_i32_50 : i32
      %c0_51 = arith.constant 0 : index
      %60 = arith.index_cast %59 : i32 to index
      %c2_52 = arith.constant 2 : index
      %c0_53 = arith.constant 0 : index
      %61 = vector.load %arg2[%c0_51, %60, %c2_52, %c0_53] : memref<1x10x10x128xbf16, #tpu.memory_space<vmem>>, vector<1x1x6x128xbf16>
      %62 = vector.shape_cast %61 : vector<1x1x6x128xbf16> to vector<6x128xbf16>
      %c7 = arith.constant 7 : index
      %c0_54 = arith.constant 0 : index
      %c0_55 = arith.constant 0 : index
      %63 = vector.load %arg3[%c7, %c0_54, %c0_55] : memref<9x128x128xbf16, #tpu.memory_space<vmem>>, vector<1x128x128xbf16>
      %64 = vector.shape_cast %63 : vector<1x128x128xbf16> to vector<128x128xbf16>
      %cst_56 = arith.constant dense<0.000000e+00> : vector<6x128xf32>
      %65 = tpu.matmul %62, %64, %cst_56 {dimension_numbers = #tpu.dot_dimension_numbers<[1], [0], [0], [1], [0, 0, 1, 1], [], []>} : vector<6x128xbf16>, vector<128x128xbf16>, vector<6x128xf32> -> vector<6x128xf32>
      %66 = arith.addf %58, %65 : vector<6x128xf32>
      %c4_i32_57 = arith.constant 4 : i32
      %67 = arith.addi %arg6, %c4_i32_57 : i32
      %c0_58 = arith.constant 0 : index
      %68 = arith.index_cast %67 : i32 to index
      %c4_59 = arith.constant 4 : index
      %c0_60 = arith.constant 0 : index
      %69 = vector.load %arg2[%c0_58, %68, %c4_59, %c0_60] : memref<1x10x10x128xbf16, #tpu.memory_space<vmem>>, vector<1x1x6x128xbf16>
      %70 = vector.shape_cast %69 : vector<1x1x6x128xbf16> to vector<6x128xbf16>
      %c8 = arith.constant 8 : index
      %c0_61 = arith.constant 0 : index
      %c0_62 = arith.constant 0 : index
      %71 = vector.load %arg3[%c8, %c0_61, %c0_62] : memref<9x128x128xbf16, #tpu.memory_space<vmem>>, vector<1x128x128xbf16>
      %72 = vector.shape_cast %71 : vector<1x128x128xbf16> to vector<128x128xbf16>
      %cst_63 = arith.constant dense<0.000000e+00> : vector<6x128xf32>
      %73 = tpu.matmul %70, %72, %cst_63 {dimension_numbers = #tpu.dot_dimension_numbers<[1], [0], [0], [1], [0, 0, 1, 1], [], []>} : vector<6x128xbf16>, vector<128x128xbf16>, vector<6x128xf32> -> vector<6x128xf32>
      %74 = arith.addf %66, %73 : vector<6x128xf32>
      %75 = vector.broadcast %0 : vector<1x128xf32> to vector<6x128xf32>
      %76 = arith.addf %74, %75 : vector<6x128xf32>
      %cst_64 = arith.constant 0.000000e+00 : f32
      %77 = vector.broadcast %cst_64 : f32 to vector<6x128xf32>
      %78 = arith.maximumf %76, %77 : vector<6x128xf32>
      %79 = arith.truncf %78 : vector<6x128xf32> to vector<6x128xbf16>
      %c0_65 = arith.constant 0 : index
      %80 = arith.index_cast %arg6 : i32 to index
      %c0_66 = arith.constant 0 : index
      %c0_67 = arith.constant 0 : index
      %81 = vector.load %arg5[%c0_65, %80, %c0_66, %c0_67] : memref<1x6x6x128xbf16, #tpu.memory_space<vmem>>, vector<1x1x6x128xbf16>
      %82 = vector.shape_cast %81 : vector<1x1x6x128xbf16> to vector<6x128xbf16>
      %83 = vector.shape_cast %79 : vector<6x128xbf16> to vector<1x1x6x128xbf16>
      tpu.vector_store %arg5[%c0_65, %80, %c0_66, %c0_67], %83 {strides = array<i32>} : memref<1x6x6x128xbf16, #tpu.memory_space<vmem>>, vector<1x1x6x128xbf16>,
    }
    %c6_i32_1 = arith.constant 6 : i32
    return
  }
  func.func @transform_0(%arg0: i32, %arg1: i32) -> (i32, i32, i32, i32) {
    %c0_i32 = arith.constant 0 : i32
    %c0_i32_0 = arith.constant 0 : i32
    %c0_i32_1 = arith.constant 0 : i32
    %c0_i32_2 = arith.constant 0 : i32
    return %arg0, %c0_i32, %c0_i32_0, %c0_i32_1 : i32, i32, i32, i32
  }
  func.func @transform_1(%arg0: i32, %arg1: i32) -> (i32, i32, i32) {
    %c0_i32 = arith.constant 0 : i32
    %c0_i32_0 = arith.constant 0 : i32
    %c0_i32_1 = arith.constant 0 : i32
    return %c0_i32, %c0_i32_0, %arg1 : i32, i32, i32
  }
  func.func @transform_2(%arg0: i32, %arg1: i32) -> (i32, i32) {
    %c0_i32 = arith.constant 0 : i32
    %c0_i32_0 = arith.constant 0 : i32
    return %c0_i32, %arg1 : i32, i32
  }
  func.func @transform_3(%arg0: i32, %arg1: i32) -> (i32, i32, i32, i32) {
    %c0_i32 = arith.constant 0 : i32
    %c0_i32_0 = arith.constant 0 : i32
    %c0_i32_1 = arith.constant 0 : i32
    return %arg0, %c0_i32, %c0_i32_0, %arg1 : i32, i32, i32, i32
  }
}

module attributes {stable_mosaic.version = 11 : i64} {
  func.func @kernel(%arg0: i32, %arg1: i32, %arg2: i32, %arg3: memref<256x147xbf16, #tpu.memory_space<vmem>>, %arg4: memref<147x64xbf16, #tpu.memory_space<vmem>>, %arg5: memref<1x64xf32, #tpu.memory_space<vmem>>, %arg6: memref<256x64xbf16, #tpu.memory_space<vmem>>, %arg7: memref<256x64xf32, #tpu.memory_space<vmem>>) attributes {dimension_semantics = [#tpu.dimension_semantics<parallel>, #tpu.dimension_semantics<parallel>, #tpu.dimension_semantics<arbitrary>], iteration_bounds = array<i64: 2, 1, 1>, scalar_prefetch = 0 : i64, scratch_operands = 1 : i64, tpu.core_type = #tpu.core_type<tc>, window_params = [{transform_indices = @transform_0, window_bounds = array<i64: 256, 147>}, {transform_indices = @transform_1, window_bounds = array<i64: 147, 64>}, {transform_indices = @transform_2, window_bounds = array<i64: 1, 64>}, {transform_indices = @transform_3, window_bounds = array<i64: 256, 64>}]} {
    %c0_i32 = arith.constant 0 : i32
    %0 = arith.cmpi eq, %arg2, %c0_i32 : i32
    %1 = arith.extui %0 : i1 to i32
    %c0_i32_0 = arith.constant 0 : i32
    %2 = arith.cmpi ne, %1, %c0_i32_0 : i32
    scf.if %2 {
      %cst_10 = arith.constant 0.000000e+00 : f32
      %12 = vector.broadcast %cst_10 : f32 to vector<256x64xf32>
      %c0_11 = arith.constant 0 : index
      %c0_12 = arith.constant 0 : index
      %13 = vector.load %arg7[%c0_11, %c0_12] : memref<256x64xf32, #tpu.memory_space<vmem>>, vector<256x64xf32>
      tpu.vector_store %arg7[%c0_11, %c0_12], %12 {strides = array<i32>} : memref<256x64xf32, #tpu.memory_space<vmem>>, vector<256x64xf32>,
    } else {
    }
    %c0 = arith.constant 0 : index
    %c0_1 = arith.constant 0 : index
    %3 = vector.load %arg7[%c0, %c0_1] : memref<256x64xf32, #tpu.memory_space<vmem>>, vector<256x64xf32>
    %c0_2 = arith.constant 0 : index
    %c0_3 = arith.constant 0 : index
    %4 = vector.load %arg3[%c0_2, %c0_3] : memref<256x147xbf16, #tpu.memory_space<vmem>>, vector<256x147xbf16>
    %c0_4 = arith.constant 0 : index
    %c0_5 = arith.constant 0 : index
    %5 = vector.load %arg4[%c0_4, %c0_5] : memref<147x64xbf16, #tpu.memory_space<vmem>>, vector<147x64xbf16>
    %cst = arith.constant dense<0.000000e+00> : vector<256x64xf32>
    %6 = tpu.matmul %4, %5, %cst {dimension_numbers = #tpu.dot_dimension_numbers<[1], [0], [0], [1], [0, 0, 1, 1], [], []>} : vector<256x147xbf16>, vector<147x64xbf16>, vector<256x64xf32> -> vector<256x64xf32>
    %7 = arith.addf %3, %6 : vector<256x64xf32>
    %c0_6 = arith.constant 0 : index
    %c0_7 = arith.constant 0 : index
    %8 = vector.load %arg7[%c0_6, %c0_7] : memref<256x64xf32, #tpu.memory_space<vmem>>, vector<256x64xf32>
    tpu.vector_store %arg7[%c0_6, %c0_7], %7 {strides = array<i32>} : memref<256x64xf32, #tpu.memory_space<vmem>>, vector<256x64xf32>,
    %c0_i32_8 = arith.constant 0 : i32
    %9 = arith.cmpi eq, %arg2, %c0_i32_8 : i32
    %10 = arith.extui %9 : i1 to i32
    %c0_i32_9 = arith.constant 0 : i32
    %11 = arith.cmpi ne, %10, %c0_i32_9 : i32
    scf.if %11 {
      %c0_10 = arith.constant 0 : index
      %c0_11 = arith.constant 0 : index
      %12 = vector.load %arg7[%c0_10, %c0_11] : memref<256x64xf32, #tpu.memory_space<vmem>>, vector<256x64xf32>
      %c0_12 = arith.constant 0 : index
      %c0_13 = arith.constant 0 : index
      %13 = vector.load %arg5[%c0_12, %c0_13] : memref<1x64xf32, #tpu.memory_space<vmem>>, vector<1x64xf32>
      %14 = vector.broadcast %13 : vector<1x64xf32> to vector<256x64xf32>
      %15 = arith.addf %12, %14 : vector<256x64xf32>
      %cst_14 = arith.constant 0.000000e+00 : f32
      %16 = vector.broadcast %cst_14 : f32 to vector<256x64xf32>
      %17 = arith.maximumf %15, %16 : vector<256x64xf32>
      %18 = arith.truncf %17 : vector<256x64xf32> to vector<256x64xbf16>
      %c0_15 = arith.constant 0 : index
      %c0_16 = arith.constant 0 : index
      %19 = vector.load %arg6[%c0_15, %c0_16] : memref<256x64xbf16, #tpu.memory_space<vmem>>, vector<256x64xbf16>
      tpu.vector_store %arg6[%c0_15, %c0_16], %18 {strides = array<i32>} : memref<256x64xbf16, #tpu.memory_space<vmem>>, vector<256x64xbf16>,
    } else {
    }
    return
  }
  func.func @transform_0(%arg0: i32, %arg1: i32, %arg2: i32) -> (i32, i32) {
    %c0_i32 = arith.constant 0 : i32
    return %arg0, %arg2 : i32, i32
  }
  func.func @transform_1(%arg0: i32, %arg1: i32, %arg2: i32) -> (i32, i32) {
    %c0_i32 = arith.constant 0 : i32
    return %arg2, %arg1 : i32, i32
  }
  func.func @transform_2(%arg0: i32, %arg1: i32, %arg2: i32) -> (i32, i32) {
    %c0_i32 = arith.constant 0 : i32
    %c0_i32_0 = arith.constant 0 : i32
    return %c0_i32, %arg1 : i32, i32
  }
  func.func @transform_3(%arg0: i32, %arg1: i32, %arg2: i32) -> (i32, i32) {
    %c0_i32 = arith.constant 0 : i32
    return %arg0, %arg1 : i32, i32
  }
}

</mosaic_0001>

<llo_original>
// kernel: tpu_custom_call.1
$region0: #{tpu_custom_call.1}
  #allocation0 [shape = 'u32[]', space=smem, size = 0x4, offset = 0x4, fixed_abs, tag = 'smem constant byte address 0x4 - core index']
  #allocation1 [shape = 'u32[144,128]{1,0:T(1,128)}', space=vmem, size = 0x12000, scoped, tag = 'internal scratch']
  %s0 = inlined_call_operand.hbm [shape: bf16[1,10,10,128], index: 0, kind: input, shape index: {}]
  %s1 = inlined_call_operand.hbm [shape: bf16[9,128,128], index: 1, kind: input, shape index: {}]
  %s2 = inlined_call_operand.vmem [shape: f32[1,128], index: 2, kind: input, shape index: {}]
  %s3 = inlined_call_operand.hbm [shape: bf16[1,6,6,128], index: 3, kind: output, shape index: {}]
  %s4 = sld [smem:[#allocation0]]
  $region37: #{tpu_custom_call.1} parent=0
    _
  %s6 = ssub.s32 1, %s4
  %s7 = scalar_select 0, %s6, %s4
  $region1: #{tpu_custom_call.1} parent=0
    #allocation2 [shape = 'u8[40960]{0}', space=vmem, size = 0xa000, scoped, tag = 'input window, operand 0, single buffered']
    #allocation3 [shape = 's32[1]{0}', space=sflag, size = 0x4, scoped, tag = 'scoped memory for tpu_custom_call.1']
    #allocation4 [shape = 's32[1]{0}', space=sflag, size = 0x4, scoped, tag = 'scoped memory for tpu_custom_call.1']
    #allocation5 [shape = 'u8[294912]{0}', space=vmem, size = 0x48000, scoped, tag = 'input window, operand 1, single buffered']
    #allocation6 [shape = 's32[1]{0}', space=sflag, size = 0x4, scoped, tag = 'scoped memory for tpu_custom_call.1']
    #allocation7 [shape = 'u8[12288]{0}', space=vmem, size = 0x3000, scoped, tag = 'output window, operand 0, single buffered']
    %8 = vsyncpa [#allocation3], 0
    %9 = vsyncpa [#allocation6], 0
    %10 = vsyncpa [#allocation4], 0
    // Predicated region
    $region2: #{tpu_custom_call.1} parent=1 // pred_check
      _
    $region3: #{tpu_custom_call.1} parent=1 // pred_check_branch
      %12 = sbr.rel (0) target = $region5
    $region4: #{tpu_custom_call.1} parent=1 // pred_region
      %s14 = ssub.s32 1280, 1280
      %15 = vsyncadd [#allocation3], %s14
      %s16 = sshll.u32 [#allocation2], 4
      %s17 = int_to_ptr.vmem [resolvable:$true] %s16
      %22 = dma.hbm_to_vmem [thread:$0]  %s0, 1280, %s17, [#allocation3], 64, 64, 4
    $region5: #{tpu_custom_call.1} parent=1 // pred_fallthru
      _
    // Predicated region
    $region6: #{tpu_custom_call.1} parent=1 // pred_check
      _
    $region7: #{tpu_custom_call.1} parent=1 // pred_check_branch
      %24 = sbr.rel (0) target = $region9
    $region8: #{tpu_custom_call.1} parent=1 // pred_region
      %s26 = ssub.s32 9216, 9216
      %27 = vsyncadd [#allocation6], %s26
      %s28 = sshll.u32 [#allocation5], 4
      %s29 = int_to_ptr.vmem [resolvable:$true] %s28
      %34 = dma.hbm_to_vmem [thread:$0]  %s1, 9216, %s29, [#allocation6], 64, 64, 4
    $region9: #{tpu_custom_call.1} parent=1 // pred_fallthru
      _
    // Predicated region
    $region10: #{tpu_custom_call.1} parent=1 // pred_check
      _
    $region11: #{tpu_custom_call.1} parent=1 // pred_check_branch
      %36 = sbr.rel (0) target = $region13
    $region12: #{tpu_custom_call.1} parent=1 // pred_region
      _
    $region13: #{tpu_custom_call.1} parent=1 // pred_fallthru
      _
    // Predicated region
    $region14: #{tpu_custom_call.1} parent=1 // pred_check
      _
    $region15: #{tpu_custom_call.1} parent=1 // pred_check_branch
      %38 = sbr.rel (0) target = $region17
    $region16: #{tpu_custom_call.1} parent=1 // pred_region
      %39 = dma.done [#allocation3], 1280
    $region17: #{tpu_custom_call.1} parent=1 // pred_fallthru
      _
    // Predicated region
    $region18: #{tpu_custom_call.1} parent=1 // pred_check
      _
    $region19: #{tpu_custom_call.1} parent=1 // pred_check_branch
      %41 = sbr.rel (0) target = $region21
    $region20: #{tpu_custom_call.1} parent=1 // pred_region
      %42 = dma.done [#allocation6], 9216
    $region21: #{tpu_custom_call.1} parent=1 // pred_fallthru
      _
    %v44 = vld [vmem:[%s2] sm:$0x1]
    loop: start=0, step=1, limit=6
    $region22: #{tpu_custom_call.1} parent=1 // loop_pre_header
      _
    $region23: #{tpu_custom_call.1} parent=1 // loop_header
      %s46 = sphi 0, %s50
      %p47 = scmp.ge.s32.totalorder %s46, 6
    $region24: #{tpu_custom_call.1} parent=1 // loop_header_branch
      %49 = sbr.rel (%p47) target = $region28
    $region25: #{tpu_custom_call.1} parent=1 // loop_body
      %s51 = smul.u32 %s46, 2
      %s52 = smul.addr %s51, 4
      %s53 = scalar_lea.vmem [#allocation2], %s52
      %v54 = vld [vmem:[%s53] sm:$0x7]
      %v55 = vld [vmem:[#allocation5] sm:$0xf]
      %v56 = vld [vmem:[#allocation5 + $0x4] sm:$0xf]
      %v57 = vld [vmem:[#allocation5 + $0x8] sm:$0xf]
      %v58 = vld [vmem:[#allocation5 + $0xc] sm:$0xf]
      %v59 = vld [vmem:[#allocation5 + $0x10] sm:$0xf]
      %v60 = vld [vmem:[#allocation5 + $0x14] sm:$0xf]
      %v61 = vld [vmem:[#allocation5 + $0x18] sm:$0xf]
      %v62 = vld [vmem:[#allocation5 + $0x1c] sm:$0xf]
      %v63 = vld [vmem:[#allocation5 + $0x20] sm:$0xf]
      %v64 = vld [vmem:[#allocation5 + $0x24] sm:$0xf]
      %v65 = vld [vmem:[#allocation5 + $0x28] sm:$0xf]
      %v66 = vld [vmem:[#allocation5 + $0x2c] sm:$0xf]
      %v67 = vld [vmem:[#allocation5 + $0x30] sm:$0xf]
      %v68 = vld [vmem:[#allocation5 + $0x34] sm:$0xf]
      %v69 = vld [vmem:[#allocation5 + $0x38] sm:$0xf]
      %v70 = vld [vmem:[#allocation5 + $0x3c] sm:$0xf]
      %v71 = vld [vmem:[%s53] sm:$0xe]
      %s72 = scalar_lea.vmem [#allocation5], 64
      %v73 = vld [vmem:[%s72] sm:$0xf]
      %v74 = vld [vmem:[%s72 + $0x4] sm:$0xf]
      %v75 = vld [vmem:[%s72 + $0x8] sm:$0xf]
      %v76 = vld [vmem:[%s72 + $0xc] sm:$0xf]
      %v77 = vld [vmem:[%s72 + $0x10] sm:$0xf]
      %v78 = vld [vmem:[%s72 + $0x14] sm:$0xf]
      %v79 = vld [vmem:[%s72 + $0x18] sm:$0xf]
      %v80 = vld [vmem:[%s72 + $0x1c] sm:$0xf]
      %v81 = vld [vmem:[%s72 + $0x20] sm:$0xf]
      %v82 = vld [vmem:[%s72 + $0x24] sm:$0xf]
      %v83 = vld [vmem:[%s72 + $0x28] sm:$0xf]
      %v84 = vld [vmem:[%s72 + $0x2c] sm:$0xf]
      %v85 = vld [vmem:[%s72 + $0x30] sm:$0xf]
      %v86 = vld [vmem:[%s72 + $0x34] sm:$0xf]
      %v87 = vld [vmem:[%s72 + $0x38] sm:$0xf]
      %v88 = vld [vmem:[%s72 + $0x3c] sm:$0xf]
      %v90 = vunpack.c.l.b16 %v71
      %v91 = vpack.c.b16 %v90, %v90
      %v92 = vrot.slane %v91, 1
      %v110 = vunpack.c.l.b16 %v73
      %v111 = vunpack.c.l.b16 %v74
      %v112 = vunpack.c.l.b16 %v75
      %v113 = vunpack.c.l.b16 %v76
      %v114 = vunpack.c.l.b16 %v77
      %v115 = vunpack.c.l.b16 %v78
      %v116 = vunpack.c.l.b16 %v79
      %v117 = vunpack.c.l.b16 %v80
      %v118 = vunpack.c.l.b16 %v81
      %v119 = vunpack.c.l.b16 %v82
      %v120 = vunpack.c.l.b16 %v83
      %v121 = vunpack.c.l.b16 %v84
      %v122 = vunpack.c.l.b16 %v85
      %v123 = vunpack.c.l.b16 %v86
      %v124 = vunpack.c.l.b16 %v87
      %v125 = vunpack.c.l.b16 %v88
      %v126 = vpack.c.b16 %v111, %v110
      %v127 = vpack.c.b16 %v113, %v112
      %v128 = vpack.c.b16 %v115, %v114
      %v129 = vpack.c.b16 %v117, %v116
      %v130 = vpack.c.b16 %v119, %v118
      %v131 = vpack.c.b16 %v121, %v120
      %v132 = vpack.c.b16 %v123, %v122
      %v133 = vpack.c.b16 %v125, %v124
      %142 = vmatprep.subr.bf16.mxu0 0
      %143 = vmatpush1.bf16.msra.mxu0 %v126
      %144 = vmatprep.subr.bf16.mxu0 0
      %145 = vmatpush1.bf16.msra.mxu0 %v127
      %146 = vmatprep.subr.bf16.mxu0 0
      %147 = vmatpush1.bf16.msra.mxu0 %v128
      %148 = vmatprep.subr.bf16.mxu0 0
      %149 = vmatpush1.bf16.msra.mxu0 %v129
      %150 = vmatprep.subr.bf16.mxu0 0
      %151 = vmatpush1.bf16.msra.mxu0 %v130
      %152 = vmatprep.subr.bf16.mxu0 0
      %153 = vmatpush1.bf16.msra.mxu0 %v131
      %154 = vmatprep.subr.bf16.mxu0 0
      %155 = vmatpush1.bf16.msra.mxu0 %v132
      %156 = vmatprep.subr.bf16.mxu0 0
      %157 = vmatpush1.bf16.msra.mxu0 %v133
      %158 = vmatprep.subr.bf16.mxu0 0
      %159 = vmatpush1.bf16.msra.mxu0 0
      %160 = vmatprep.subr.bf16.mxu0 0
      %161 = vmatpush1.bf16.msra.mxu0 0
      %162 = vmatprep.subr.bf16.mxu0 0
      %163 = vmatpush1.bf16.msra.mxu0 0
      %164 = vmatprep.subr.bf16.mxu0 0
      %165 = vmatpush1.bf16.msra.mxu0 0
      %166 = vmatprep.subr.bf16.mxu0 0
      %167 = vmatpush1.bf16.msra.mxu0 0
      %168 = vmatprep.subr.bf16.mxu0 0
      %169 = vmatpush1.bf16.msra.mxu0 0
      %170 = vmatprep.subr.bf16.mxu0 0
      %171 = vmatpush1.bf16.msra.mxu0 0
      %172 = vmatprep.subr.bf16.mxu0 0
      %173 = vmatpush1.bf16.msra.mxu0 0
      %174 = vmatprep.mubr.bf16.mxu0 0
      %175 = vmatmul.mubr.bf16.gmra.mrb[0].mxu0 %v92
      %v176 = vpop.f32.mrb[0].mxu0
      %v177 = vadd.f32 0.0, %v176
      %v178 = vpop.f32.mrb[0].mxu0
      %v179 = vpop.f32.mrb[0].mxu0
      %v180 = vpop.f32.mrb[0].mxu0
      %181 = vdwg.mxu0
      %v198 = vunpack.c.l.b16 %v55
      %v199 = vunpack.c.l.b16 %v56
      %v200 = vunpack.c.l.b16 %v57
      %v201 = vunpack.c.l.b16 %v58
      %v202 = vunpack.c.l.b16 %v59
      %v203 = vunpack.c.l.b16 %v60
      %v204 = vunpack.c.l.b16 %v61
      %v205 = vunpack.c.l.b16 %v62
      %v206 = vunpack.c.l.b16 %v63
      %v207 = vunpack.c.l.b16 %v64
      %v208 = vunpack.c.l.b16 %v65
      %v209 = vunpack.c.l.b16 %v66
      %v210 = vunpack.c.l.b16 %v67
      %v211 = vunpack.c.l.b16 %v68
      %v212 = vunpack.c.l.b16 %v69
      %v213 = vunpack.c.l.b16 %v70
      %v214 = vpack.c.b16 %v199, %v198
      %v215 = vpack.c.b16 %v201, %v200
      %v216 = vpack.c.b16 %v203, %v202
      %v217 = vpack.c.b16 %v205, %v204
      %v218 = vpack.c.b16 %v207, %v206
      %v219 = vpack.c.b16 %v209, %v208
      %v220 = vpack.c.b16 %v211, %v210
      %v221 = vpack.c.b16 %v213, %v212
      %230 = vmatprep.subr.bf16.mxu0 0
      %231 = vmatpush1.bf16.msra.mxu0 %v214
      %232 = vmatprep.subr.bf16.mxu0 0
      %233 = vmatpush1.bf16.msra.mxu0 %v215
      %234 = vmatprep.subr.bf16.mxu0 0
      %235 = vmatpush1.bf16.msra.mxu0 %v216
      %236 = vmatprep.subr.bf16.mxu0 0
      %237 = vmatpush1.bf16.msra.mxu0 %v217
      %238 = vmatprep.subr.bf16.mxu0 0
      %239 = vmatpush1.bf16.msra.mxu0 %v218
      %240 = vmatprep.subr.bf16.mxu0 0
      %241 = vmatpush1.bf16.msra.mxu0 %v219
      %242 = vmatprep.subr.bf16.mxu0 0
      %243 = vmatpush1.bf16.msra.mxu0 %v220
      %244 = vmatprep.subr.bf16.mxu0 0
      %245 = vmatpush1.bf16.msra.mxu0 %v221
      %246 = vmatprep.subr.bf16.mxu0 0
      %247 = vmatpush1.bf16.msra.mxu0 0
      %248 = vmatprep.subr.bf16.mxu0 0
      %249 = vmatpush1.bf16.msra.mxu0 0
      %250 = vmatprep.subr.bf16.mxu0 0
      %251 = vmatpush1.bf16.msra.mxu0 0
      %252 = vmatprep.subr.bf16.mxu0 0
      %253 = vmatpush1.bf16.msra.mxu0 0
      %254 = vmatprep.subr.bf16.mxu0 0
      %255 = vmatpush1.bf16.msra.mxu0 0
      %256 = vmatprep.subr.bf16.mxu0 0
      %257 = vmatpush1.bf16.msra.mxu0 0
      %258 = vmatprep.subr.bf16.mxu0 0
      %259 = vmatpush1.bf16.msra.mxu0 0
      %260 = vmatprep.subr.bf16.mxu0 0
      %261 = vmatpush1.bf16.msra.mxu0 0
      %262 = vmatprep.mubr.bf16.mxu0 0
      %263 = vmatmul.mubr.bf16.gmra.mrb[0].mxu0 %v54
      %v264 = vpop.f32.mrb[0].mxu0
      %v265 = vadd.f32 %v177, %v264
      %v266 = vpop.f32.mrb[0].mxu0
      %v267 = vpop.f32.mrb[0].mxu0
      %v268 = vpop.f32.mrb[0].mxu0
      %269 = vdwg.mxu0
      %v270 = vld [vmem:[%s53] sm:$0xc]
      %v271 = vld [vmem:[%s53 + $0x4] sm:$0x1]
      %s272 = scalar_lea.vmem [#allocation5], 128
      %v273 = vld [vmem:[%s272] sm:$0xf]
      %v274 = vld [vmem:[%s272 + $0x4] sm:$0xf]
      %v275 = vld [vmem:[%s272 + $0x8] sm:$0xf]
      %v276 = vld [vmem:[%s272 + $0xc] sm:$0xf]
      %v277 = vld [vmem:[%s272 + $0x10] sm:$0xf]
      %v278 = vld [vmem:[%s272 + $0x14] sm:$0xf]
      %v279 = vld [vmem:[%s272 + $0x18] sm:$0xf]
      %v280 = vld [vmem:[%s272 + $0x1c] sm:$0xf]
      %v281 = vld [vmem:[%s272 + $0x20] sm:$0xf]
      %v282 = vld [vmem:[%s272 + $0x24] sm:$0xf]
      %v283 = vld [vmem:[%s272 + $0x28] sm:$0xf]
      %v284 = vld [vmem:[%s272 + $0x2c] sm:$0xf]
      %v285 = vld [vmem:[%s272 + $0x30] sm:$0xf]
      %v286 = vld [vmem:[%s272 + $0x34] sm:$0xf]
      %v287 = vld [vmem:[%s272 + $0x38] sm:$0xf]
      %v288 = vld [vmem:[%s272 + $0x3c] sm:$0xf]
      %v291 = vunpack.c.l.b16 %v270
      %v292 = vunpack.c.l.b16 %v271
      %v293 = vpack.c.b16 %v292, %v291
      %v294 = vrot.slane %v293, 2
      %v312 = vunpack.c.l.b16 %v273
      %v313 = vunpack.c.l.b16 %v274
      %v314 = vunpack.c.l.b16 %v275
      %v315 = vunpack.c.l.b16 %v276
      %v316 = vunpack.c.l.b16 %v277
      %v317 = vunpack.c.l.b16 %v278
      %v318 = vunpack.c.l.b16 %v279
      %v319 = vunpack.c.l.b16 %v280
      %v320 = vunpack.c.l.b16 %v281
      %v321 = vunpack.c.l.b16 %v282
      %v322 = vunpack.c.l.b16 %v283
      %v323 = vunpack.c.l.b16 %v284
      %v324 = vunpack.c.l.b16 %v285
      %v325 = vunpack.c.l.b16 %v286
      %v326 = vunpack.c.l.b16 %v287
      %v327 = vunpack.c.l.b16 %v288
      %v328 = vpack.c.b16 %v313, %v312
      %v329 = vpack.c.b16 %v315, %v314
      %v330 = vpack.c.b16 %v317, %v316
      %v331 = vpack.c.b16 %v319, %v318
      %v332 = vpack.c.b16 %v321, %v320
      %v333 = vpack.c.b16 %v323, %v322
      %v334 = vpack.c.b16 %v325, %v324
      %v335 = vpack.c.b16 %v327, %v326
      %344 = vmatprep.subr.bf16.mxu0 0
      %345 = vmatpush1.bf16.msra.mxu0 %v328
      %346 = vmatprep.subr.bf16.mxu0 0
      %347 = vmatpush1.bf16.msra.mxu0 %v329
      %348 = vmatprep.subr.bf16.mxu0 0
      %349 = vmatpush1.bf16.msra.mxu0 %v330
      %350 = vmatprep.subr.bf16.mxu0 0
      %351 = vmatpush1.bf16.msra.mxu0 %v331
      %352 = vmatprep.subr.bf16.mxu0 0
      %353 = vmatpush1.bf16.msra.mxu0 %v332
      %354 = vmatprep.subr.bf16.mxu0 0
      %355 = vmatpush1.bf16.msra.mxu0 %v333
      %356 = vmatprep.subr.bf16.mxu0 0
      %357 = vmatpush1.bf16.msra.mxu0 %v334
      %358 = vmatprep.subr.bf16.mxu0 0
      %359 = vmatpush1.bf16.msra.mxu0 %v335
      %360 = vmatprep.subr.bf16.mxu0 0
      %361 = vmatpush1.bf16.msra.mxu0 0
      %362 = vmatprep.subr.bf16.mxu0 0
      %363 = vmatpush1.bf16.msra.mxu0 0
      %364 = vmatprep.subr.bf16.mxu0 0
      %365 = vmatpush1.bf16.msra.mxu0 0
      %366 = vmatprep.subr.bf16.mxu0 0
      %367 = vmatpush1.bf16.msra.mxu0 0
      %368 = vmatprep.subr.bf16.mxu0 0
      %369 = vmatpush1.bf16.msra.mxu0 0
      %370 = vmatprep.subr.bf16.mxu0 0
      %371 = vmatpush1.bf16.msra.mxu0 0
      %372 = vmatprep.subr.bf16.mxu0 0
      %373 = vmatpush1.bf16.msra.mxu0 0
      %374 = vmatprep.subr.bf16.mxu0 0
      %375 = vmatpush1.bf16.msra.mxu0 0
      %376 = vmatprep.mubr.bf16.mxu0 0
      %377 = vmatmul.mubr.bf16.gmra.mrb[0].mxu0 %v294
      %v378 = vpop.f32.mrb[0].mxu0
      %v379 = vadd.f32 0.0, %v378
      %v380 = vpop.f32.mrb[0].mxu0
      %v381 = vpop.f32.mrb[0].mxu0
      %v382 = vpop.f32.mrb[0].mxu0
      %383 = vdwg.mxu0
      %v384 = vadd.f32 %v265, %v379
      %s385 = sadd.s32 %s46, 2
      %s386 = smul.u32 %s385, 2
      %s387 = smul.addr %s386, 4
      %s388 = scalar_lea.vmem [#allocation2], %s387
      %v389 = vld [vmem:[%s388] sm:$0x7]
      %s390 = scalar_lea.vmem [#allocation5], 192
      %v391 = vld [vmem:[%s390] sm:$0xf]
      %v392 = vld [vmem:[%s390 + $0x4] sm:$0xf]
      %v393 = vld [vmem:[%s390 + $0x8] sm:$0xf]
      %v394 = vld [vmem:[%s390 + $0xc] sm:$0xf]
      %v395 = vld [vmem:[%s390 + $0x10] sm:$0xf]
      %v396 = vld [vmem:[%s390 + $0x14] sm:$0xf]
      %v397 = vld [vmem:[%s390 + $0x18] sm:$0xf]
      %v398 = vld [vmem:[%s390 + $0x1c] sm:$0xf]
      %v399 = vld [vmem:[%s390 + $0x20] sm:$0xf]
      %v400 = vld [vmem:[%s390 + $0x24] sm:$0xf]
      %v401 = vld [vmem:[%s390 + $0x28] sm:$0xf]
      %v402 = vld [vmem:[%s390 + $0x2c] sm:$0xf]
      %v403 = vld [vmem:[%s390 + $0x30] sm:$0xf]
      %v404 = vld [vmem:[%s390 + $0x34] sm:$0xf]
      %v405 = vld [vmem:[%s390 + $0x38] sm:$0xf]
      %v406 = vld [vmem:[%s390 + $0x3c] sm:$0xf]
      %v423 = vunpack.c.l.b16 %v391
      %v424 = vunpack.c.l.b16 %v392
      %v425 = vunpack.c.l.b16 %v393
      %v426 = vunpack.c.l.b16 %v394
      %v427 = vunpack.c.l.b16 %v395
      %v428 = vunpack.c.l.b16 %v396
      %v429 = vunpack.c.l.b16 %v397
      %v430 = vunpack.c.l.b16 %v398
      %v431 = vunpack.c.l.b16 %v399
      %v432 = vunpack.c.l.b16 %v400
      %v433 = vunpack.c.l.b16 %v401
      %v434 = vunpack.c.l.b16 %v402
      %v435 = vunpack.c.l.b16 %v403
      %v436 = vunpack.c.l.b16 %v404
      %v437 = vunpack.c.l.b16 %v405
      %v438 = vunpack.c.l.b16 %v406
      %v439 = vpack.c.b16 %v424, %v423
      %v440 = vpack.c.b16 %v426, %v425
      %v441 = vpack.c.b16 %v428, %v427
      %v442 = vpack.c.b16 %v430, %v429
      %v443 = vpack.c.b16 %v432, %v431
      %v444 = vpack.c.b16 %v434, %v433
      %v445 = vpack.c.b16 %v436, %v435
      %v446 = vpack.c.b16 %v438, %v437
      %455 = vmatprep.subr.bf16.mxu0 0
      %456 = vmatpush1.bf16.msra.mxu0 %v439
      %457 = vmatprep.subr.bf16.mxu0 0
      %458 = vmatpush1.bf16.msra.mxu0 %v440
      %459 = vmatprep.subr.bf16.mxu0 0
      %460 = vmatpush1.bf16.msra.mxu0 %v441
      %461 = vmatprep.subr.bf16.mxu0 0
      %462 = vmatpush1.bf16.msra.mxu0 %v442
      %463 = vmatprep.subr.bf16.mxu0 0
      %464 = vmatpush1.bf16.msra.mxu0 %v443
      %465 = vmatprep.subr.bf16.mxu0 0
      %466 = vmatpush1.bf16.msra.mxu0 %v444
      %467 = vmatprep.subr.bf16.mxu0 0
      %468 = vmatpush1.bf16.msra.mxu0 %v445
      %469 = vmatprep.subr.bf16.mxu0 0
      %470 = vmatpush1.bf16.msra.mxu0 %v446
      %471 = vmatprep.subr.bf16.mxu0 0
      %472 = vmatpush1.bf16.msra.mxu0 0
      %473 = vmatprep.subr.bf16.mxu0 0
      %474 = vmatpush1.bf16.msra.mxu0 0
      %475 = vmatprep.subr.bf16.mxu0 0
      %476 = vmatpush1.bf16.msra.mxu0 0
      %477 = vmatprep.subr.bf16.mxu0 0
      %478 = vmatpush1.bf16.msra.mxu0 0
      %479 = vmatprep.subr.bf16.mxu0 0
      %480 = vmatpush1.bf16.msra.mxu0 0
      %481 = vmatprep.subr.bf16.mxu0 0
      %482 = vmatpush1.bf16.msra.mxu0 0
      %483 = vmatprep.subr.bf16.mxu0 0
      %484 = vmatpush1.bf16.msra.mxu0 0
      %485 = vmatprep.subr.bf16.mxu0 0
      %486 = vmatpush1.bf16.msra.mxu0 0
      %487 = vmatprep.mubr.bf16.mxu0 0
      %488 = vmatmul.mubr.bf16.gmra.mrb[0].mxu0 %v389
      %v489 = vpop.f32.mrb[0].mxu0
      %v490 = vadd.f32 0.0, %v489
      %v491 = vpop.f32.mrb[0].mxu0
      %v492 = vpop.f32.mrb[0].mxu0
      %v493 = vpop.f32.mrb[0].mxu0
      %494 = vdwg.mxu0
      %v495 = vadd.f32 %v384, %v490
      %v496 = vld [vmem:[%s388] sm:$0xe]
      %s497 = scalar_lea.vmem [#allocation5], 256
      %v498 = vld [vmem:[%s497] sm:$0xf]
      %v499 = vld [vmem:[%s497 + $0x4] sm:$0xf]
      %v500 = vld [vmem:[%s497 + $0x8] sm:$0xf]
      %v501 = vld [vmem:[%s497 + $0xc] sm:$0xf]
      %v502 = vld [vmem:[%s497 + $0x10] sm:$0xf]
      %v503 = vld [vmem:[%s497 + $0x14] sm:$0xf]
      %v504 = vld [vmem:[%s497 + $0x18] sm:$0xf]
      %v505 = vld [vmem:[%s497 + $0x1c] sm:$0xf]
      %v506 = vld [vmem:[%s497 + $0x20] sm:$0xf]
      %v507 = vld [vmem:[%s497 + $0x24] sm:$0xf]
      %v508 = vld [vmem:[%s497 + $0x28] sm:$0xf]
      %v509 = vld [vmem:[%s497 + $0x2c] sm:$0xf]
      %v510 = vld [vmem:[%s497 + $0x30] sm:$0xf]
      %v511 = vld [vmem:[%s497 + $0x34] sm:$0xf]
      %v512 = vld [vmem:[%s497 + $0x38] sm:$0xf]
      %v513 = vld [vmem:[%s497 + $0x3c] sm:$0xf]
      %v515 = vunpack.c.l.b16 %v496
      %v516 = vpack.c.b16 %v515, %v515
      %v517 = vrot.slane %v516, 1
      %v535 = vunpack.c.l.b16 %v498
      %v536 = vunpack.c.l.b16 %v499
      %v537 = vunpack.c.l.b16 %v500
      %v538 = vunpack.c.l.b16 %v501
      %v539 = vunpack.c.l.b16 %v502
      %v540 = vunpack.c.l.b16 %v503
      %v541 = vunpack.c.l.b16 %v504
      %v542 = vunpack.c.l.b16 %v505
      %v543 = vunpack.c.l.b16 %v506
      %v544 = vunpack.c.l.b16 %v507
      %v545 = vunpack.c.l.b16 %v508
      %v546 = vunpack.c.l.b16 %v509
      %v547 = vunpack.c.l.b16 %v510
      %v548 = vunpack.c.l.b16 %v511
      %v549 = vunpack.c.l.b16 %v512
      %v550 = vunpack.c.l.b16 %v513
      %v551 = vpack.c.b16 %v536, %v535
      %v552 = vpack.c.b16 %v538, %v537
      %v553 = vpack.c.b16 %v540, %v539
      %v554 = vpack.c.b16 %v542, %v541
      %v555 = vpack.c.b16 %v544, %v543
      %v556 = vpack.c.b16 %v546, %v545
      %v557 = vpack.c.b16 %v548, %v547
      %v558 = vpack.c.b16 %v550, %v549
      %567 = vmatprep.subr.bf16.mxu0 0
      %568 = vmatpush1.bf16.msra.mxu0 %v551
      %569 = vmatprep.subr.bf16.mxu0 0
      %570 = vmatpush1.bf16.msra.mxu0 %v552
      %571 = vmatprep.subr.bf16.mxu0 0
      %572 = vmatpush1.bf16.msra.mxu0 %v553
      %573 = vmatprep.subr.bf16.mxu0 0
      %574 = vmatpush1.bf16.msra.mxu0 %v554
      %575 = vmatprep.subr.bf16.mxu0 0
      %576 = vmatpush1.bf16.msra.mxu0 %v555
      %577 = vmatprep.subr.bf16.mxu0 0
      %578 = vmatpush1.bf16.msra.mxu0 %v556
      %579 = vmatprep.subr.bf16.mxu0 0
      %580 = vmatpush1.bf16.msra.mxu0 %v557
      %581 = vmatprep.subr.bf16.mxu0 0
      %582 = vmatpush1.bf16.msra.mxu0 %v558
      %583 = vmatprep.subr.bf16.mxu0 0
      %584 = vmatpush1.bf16.msra.mxu0 0
      %585 = vmatprep.subr.bf16.mxu0 0
      %586 = vmatpush1.bf16.msra.mxu0 0
      %587 = vmatprep.subr.bf16.mxu0 0
      %588 = vmatpush1.bf16.msra.mxu0 0
      %589 = vmatprep.subr.bf16.mxu0 0
      %590 = vmatpush1.bf16.msra.mxu0 0
      %591 = vmatprep.subr.bf16.mxu0 0
      %592 = vmatpush1.bf16.msra.mxu0 0
      %593 = vmatprep.subr.bf16.mxu0 0
      %594 = vmatpush1.bf16.msra.mxu0 0
      %595 = vmatprep.subr.bf16.mxu0 0
      %596 = vmatpush1.bf16.msra.mxu0 0
      %597 = vmatprep.subr.bf16.mxu0 0
      %598 = vmatpush1.bf16.msra.mxu0 0
      %599 = vmatprep.mubr.bf16.mxu0 0
      %600 = vmatmul.mubr.bf16.gmra.mrb[0].mxu0 %v517
      %v601 = vpop.f32.mrb[0].mxu0
      %v602 = vadd.f32 0.0, %v601
      %v603 = vpop.f32.mrb[0].mxu0
      %v604 = vpop.f32.mrb[0].mxu0
      %v605 = vpop.f32.mrb[0].mxu0
      %606 = vdwg.mxu0
      %v607 = vadd.f32 %v495, %v602
      %v608 = vld [vmem:[%s388] sm:$0xc]
      %v609 = vld [vmem:[%s388 + $0x4] sm:$0x1]
      %s610 = scalar_lea.vmem [#allocation5], 320
      %v611 = vld [vmem:[%s610] sm:$0xf]
      %v612 = vld [vmem:[%s610 + $0x4] sm:$0xf]
      %v613 = vld [vmem:[%s610 + $0x8] sm:$0xf]
      %v614 = vld [vmem:[%s610 + $0xc] sm:$0xf]
      %v615 = vld [vmem:[%s610 + $0x10] sm:$0xf]
      %v616 = vld [vmem:[%s610 + $0x14] sm:$0xf]
      %v617 = vld [vmem:[%s610 + $0x18] sm:$0xf]
      %v618 = vld [vmem:[%s610 + $0x1c] sm:$0xf]
      %v619 = vld [vmem:[%s610 + $0x20] sm:$0xf]
      %v620 = vld [vmem:[%s610 + $0x24] sm:$0xf]
      %v621 = vld [vmem:[%s610 + $0x28] sm:$0xf]
      %v622 = vld [vmem:[%s610 + $0x2c] sm:$0xf]
      %v623 = vld [vmem:[%s610 + $0x30] sm:$0xf]
      %v624 = vld [vmem:[%s610 + $0x34] sm:$0xf]
      %v625 = vld [vmem:[%s610 + $0x38] sm:$0xf]
      %v626 = vld [vmem:[%s610 + $0x3c] sm:$0xf]
      %v629 = vunpack.c.l.b16 %v608
      %v630 = vunpack.c.l.b16 %v609
      %v631 = vpack.c.b16 %v630, %v629
      %v632 = vrot.slane %v631, 2
      %v650 = vunpack.c.l.b16 %v611
      %v651 = vunpack.c.l.b16 %v612
      %v652 = vunpack.c.l.b16 %v613
      %v653 = vunpack.c.l.b16 %v614
      %v654 = vunpack.c.l.b16 %v615
      %v655 = vunpack.c.l.b16 %v616
      %v656 = vunpack.c.l.b16 %v617
      %v657 = vunpack.c.l.b16 %v618
      %v658 = vunpack.c.l.b16 %v619
      %v659 = vunpack.c.l.b16 %v620
      %v660 = vunpack.c.l.b16 %v621
      %v661 = vunpack.c.l.b16 %v622
      %v662 = vunpack.c.l.b16 %v623
      %v663 = vunpack.c.l.b16 %v624
      %v664 = vunpack.c.l.b16 %v625
      %v665 = vunpack.c.l.b16 %v626
      %v666 = vpack.c.b16 %v651, %v650
      %v667 = vpack.c.b16 %v653, %v652
      %v668 = vpack.c.b16 %v655, %v654
      %v669 = vpack.c.b16 %v657, %v656
      %v670 = vpack.c.b16 %v659, %v658
      %v671 = vpack.c.b16 %v661, %v660
      %v672 = vpack.c.b16 %v663, %v662
      %v673 = vpack.c.b16 %v665, %v664
      %682 = vmatprep.subr.bf16.mxu0 0
      %683 = vmatpush1.bf16.msra.mxu0 %v666
      %684 = vmatprep.subr.bf16.mxu0 0
      %685 = vmatpush1.bf16.msra.mxu0 %v667
      %686 = vmatprep.subr.bf16.mxu0 0
      %687 = vmatpush1.bf16.msra.mxu0 %v668
      %688 = vmatprep.subr.bf16.mxu0 0
      %689 = vmatpush1.bf16.msra.mxu0 %v669
      %690 = vmatprep.subr.bf16.mxu0 0
      %691 = vmatpush1.bf16.msra.mxu0 %v670
      %692 = vmatprep.subr.bf16.mxu0 0
      %693 = vmatpush1.bf16.msra.mxu0 %v671
      %694 = vmatprep.subr.bf16.mxu0 0
      %695 = vmatpush1.bf16.msra.mxu0 %v672
      %696 = vmatprep.subr.bf16.mxu0 0
      %697 = vmatpush1.bf16.msra.mxu0 %v673
      %698 = vmatprep.subr.bf16.mxu0 0
      %699 = vmatpush1.bf16.msra.mxu0 0
      %700 = vmatprep.subr.bf16.mxu0 0
      %701 = vmatpush1.bf16.msra.mxu0 0
      %702 = vmatprep.subr.bf16.mxu0 0
      %703 = vmatpush1.bf16.msra.mxu0 0
      %704 = vmatprep.subr.bf16.mxu0 0
      %705 = vmatpush1.bf16.msra.mxu0 0
      %706 = vmatprep.subr.bf16.mxu0 0
      %707 = vmatpush1.bf16.msra.mxu0 0
      %708 = vmatprep.subr.bf16.mxu0 0
      %709 = vmatpush1.bf16.msra.mxu0 0
      %710 = vmatprep.subr.bf16.mxu0 0
      %711 = vmatpush1.bf16.msra.mxu0 0
      %712 = vmatprep.subr.bf16.mxu0 0
      %713 = vmatpush1.bf16.msra.mxu0 0
      %714 = vmatprep.mubr.bf16.mxu0 0
      %715 = vmatmul.mubr.bf16.gmra.mrb[0].mxu0 %v632
      %v716 = vpop.f32.mrb[0].mxu0
      %v717 = vadd.f32 0.0, %v716
      %v718 = vpop.f32.mrb[0].mxu0
      %v719 = vpop.f32.mrb[0].mxu0
      %v720 = vpop.f32.mrb[0].mxu0
      %721 = vdwg.mxu0
      %v722 = vadd.f32 %v607, %v717
      %s723 = sadd.s32 %s46, 4
      %s724 = smul.u32 %s723, 2
      %s725 = smul.addr %s724, 4
      %s726 = scalar_lea.vmem [#allocation2], %s725
      %v727 = vld [vmem:[%s726] sm:$0x7]
      %s728 = scalar_lea.vmem [#allocation5], 384
      %v729 = vld [vmem:[%s728] sm:$0xf]
      %v730 = vld [vmem:[%s728 + $0x4] sm:$0xf]
      %v731 = vld [vmem:[%s728 + $0x8] sm:$0xf]
      %v732 = vld [vmem:[%s728 + $0xc] sm:$0xf]
      %v733 = vld [vmem:[%s728 + $0x10] sm:$0xf]
      %v734 = vld [vmem:[%s728 + $0x14] sm:$0xf]
      %v735 = vld [vmem:[%s728 + $0x18] sm:$0xf]
      %v736 = vld [vmem:[%s728 + $0x1c] sm:$0xf]
      %v737 = vld [vmem:[%s728 + $0x20] sm:$0xf]
      %v738 = vld [vmem:[%s728 + $0x24] sm:$0xf]
      %v739 = vld [vmem:[%s728 + $0x28] sm:$0xf]
      %v740 = vld [vmem:[%s728 + $0x2c] sm:$0xf]
      %v741 = vld [vmem:[%s728 + $0x30] sm:$0xf]
      %v742 = vld [vmem:[%s728 + $0x34] sm:$0xf]
      %v743 = vld [vmem:[%s728 + $0x38] sm:$0xf]
      %v744 = vld [vmem:[%s728 + $0x3c] sm:$0xf]
      %v761 = vunpack.c.l.b16 %v729
      %v762 = vunpack.c.l.b16 %v730
      %v763 = vunpack.c.l.b16 %v731
      %v764 = vunpack.c.l.b16 %v732
      %v765 = vunpack.c.l.b16 %v733
      %v766 = vunpack.c.l.b16 %v734
      %v767 = vunpack.c.l.b16 %v735
      %v768 = vunpack.c.l.b16 %v736
      %v769 = vunpack.c.l.b16 %v737
      %v770 = vunpack.c.l.b16 %v738
      %v771 = vunpack.c.l.b16 %v739
      %v772 = vunpack.c.l.b16 %v740
      %v773 = vunpack.c.l.b16 %v741
      %v774 = vunpack.c.l.b16 %v742
      %v775 = vunpack.c.l.b16 %v743
      %v776 = vunpack.c.l.b16 %v744
      %v777 = vpack.c.b16 %v762, %v761
      %v778 = vpack.c.b16 %v764, %v763
      %v779 = vpack.c.b16 %v766, %v765
      %v780 = vpack.c.b16 %v768, %v767
      %v781 = vpack.c.b16 %v770, %v769
      %v782 = vpack.c.b16 %v772, %v771
      %v783 = vpack.c.b16 %v774, %v773
      %v784 = vpack.c.b16 %v776, %v775
      %793 = vmatprep.subr.bf16.mxu0 0
      %794 = vmatpush1.bf16.msra.mxu0 %v777
      %795 = vmatprep.subr.bf16.mxu0 0
      %796 = vmatpush1.bf16.msra.mxu0 %v778
      %797 = vmatprep.subr.bf16.mxu0 0
      %798 = vmatpush1.bf16.msra.mxu0 %v779
      %799 = vmatprep.subr.bf16.mxu0 0
      %800 = vmatpush1.bf16.msra.mxu0 %v780
      %801 = vmatprep.subr.bf16.mxu0 0
      %802 = vmatpush1.bf16.msra.mxu0 %v781
      %803 = vmatprep.subr.bf16.mxu0 0
      %804 = vmatpush1.bf16.msra.mxu0 %v782
      %805 = vmatprep.subr.bf16.mxu0 0
      %806 = vmatpush1.bf16.msra.mxu0 %v783
      %807 = vmatprep.subr.bf16.mxu0 0
      %808 = vmatpush1.bf16.msra.mxu0 %v784
      %809 = vmatprep.subr.bf16.mxu0 0
      %810 = vmatpush1.bf16.msra.mxu0 0
      %811 = vmatprep.subr.bf16.mxu0 0
      %812 = vmatpush1.bf16.msra.mxu0 0
      %813 = vmatprep.subr.bf16.mxu0 0
      %814 = vmatpush1.bf16.msra.mxu0 0
      %815 = vmatprep.subr.bf16.mxu0 0
      %816 = vmatpush1.bf16.msra.mxu0 0
      %817 = vmatprep.subr.bf16.mxu0 0
      %818 = vmatpush1.bf16.msra.mxu0 0
      %819 = vmatprep.subr.bf16.mxu0 0
      %820 = vmatpush1.bf16.msra.mxu0 0
      %821 = vmatprep.subr.bf16.mxu0 0
      %822 = vmatpush1.bf16.msra.mxu0 0
      %823 = vmatprep.subr.bf16.mxu0 0
      %824 = vmatpush1.bf16.msra.mxu0 0
      %825 = vmatprep.mubr.bf16.mxu0 0
      %826 = vmatmul.mubr.bf16.gmra.mrb[0].mxu0 %v727
      %v827 = vpop.f32.mrb[0].mxu0
      %v828 = vadd.f32 0.0, %v827
      %v829 = vpop.f32.mrb[0].mxu0
      %v830 = vpop.f32.mrb[0].mxu0
      %v831 = vpop.f32.mrb[0].mxu0
      %832 = vdwg.mxu0
      %v833 = vadd.f32 %v722, %v828
      %v834 = vld [vmem:[%s726] sm:$0xe]
      %s835 = scalar_lea.vmem [#allocation5], 448
      %v836 = vld [vmem:[%s835] sm:$0xf]
      %v837 = vld [vmem:[%s835 + $0x4] sm:$0xf]
      %v838 = vld [vmem:[%s835 + $0x8] sm:$0xf]
      %v839 = vld [vmem:[%s835 + $0xc] sm:$0xf]
      %v840 = vld [vmem:[%s835 + $0x10] sm:$0xf]
      %v841 = vld [vmem:[%s835 + $0x14] sm:$0xf]
      %v842 = vld [vmem:[%s835 + $0x18] sm:$0xf]
      %v843 = vld [vmem:[%s835 + $0x1c] sm:$0xf]
      %v844 = vld [vmem:[%s835 + $0x20] sm:$0xf]
      %v845 = vld [vmem:[%s835 + $0x24] sm:$0xf]
      %v846 = vld [vmem:[%s835 + $0x28] sm:$0xf]
      %v847 = vld [vmem:[%s835 + $0x2c] sm:$0xf]
      %v848 = vld [vmem:[%s835 + $0x30] sm:$0xf]
      %v849 = vld [vmem:[%s835 + $0x34] sm:$0xf]
      %v850 = vld [vmem:[%s835 + $0x38] sm:$0xf]
      %v851 = vld [vmem:[%s835 + $0x3c] sm:$0xf]
      %v853 = vunpack.c.l.b16 %v834
      %v854 = vpack.c.b16 %v853, %v853
      %v855 = vrot.slane %v854, 1
      %v873 = vunpack.c.l.b16 %v836
      %v874 = vunpack.c.l.b16 %v837
      %v875 = vunpack.c.l.b16 %v838
      %v876 = vunpack.c.l.b16 %v839
      %v877 = vunpack.c.l.b16 %v840
      %v878 = vunpack.c.l.b16 %v841
      %v879 = vunpack.c.l.b16 %v842
      %v880 = vunpack.c.l.b16 %v843
      %v881 = vunpack.c.l.b16 %v844
      %v882 = vunpack.c.l.b16 %v845
      %v883 = vunpack.c.l.b16 %v846
      %v884 = vunpack.c.l.b16 %v847
      %v885 = vunpack.c.l.b16 %v848
      %v886 = vunpack.c.l.b16 %v849
      %v887 = vunpack.c.l.b16 %v850
      %v888 = vunpack.c.l.b16 %v851
      %v889 = vpack.c.b16 %v874, %v873
      %v890 = vpack.c.b16 %v876, %v875
      %v891 = vpack.c.b16 %v878, %v877
      %v892 = vpack.c.b16 %v880, %v879
      %v893 = vpack.c.b16 %v882, %v881
      %v894 = vpack.c.b16 %v884, %v883
      %v895 = vpack.c.b16 %v886, %v885
      %v896 = vpack.c.b16 %v888, %v887
      %905 = vmatprep.subr.bf16.mxu0 0
      %906 = vmatpush1.bf16.msra.mxu0 %v889
      %907 = vmatprep.subr.bf16.mxu0 0
      %908 = vmatpush1.bf16.msra.mxu0 %v890
      %909 = vmatprep.subr.bf16.mxu0 0
      %910 = vmatpush1.bf16.msra.mxu0 %v891
      %911 = vmatprep.subr.bf16.mxu0 0
      %912 = vmatpush1.bf16.msra.mxu0 %v892
      %913 = vmatprep.subr.bf16.mxu0 0
      %914 = vmatpush1.bf16.msra.mxu0 %v893
      %915 = vmatprep.subr.bf16.mxu0 0
      %916 = vmatpush1.bf16.msra.mxu0 %v894
      %917 = vmatprep.subr.bf16.mxu0 0
      %918 = vmatpush1.bf16.msra.mxu0 %v895
      %919 = vmatprep.subr.bf16.mxu0 0
      %920 = vmatpush1.bf16.msra.mxu0 %v896
      %921 = vmatprep.subr.bf16.mxu0 0
      %922 = vmatpush1.bf16.msra.mxu0 0
      %923 = vmatprep.subr.bf16.mxu0 0
      %924 = vmatpush1.bf16.msra.mxu0 0
      %925 = vmatprep.subr.bf16.mxu0 0
      %926 = vmatpush1.bf16.msra.mxu0 0
      %927 = vmatprep.subr.bf16.mxu0 0
      %928 = vmatpush1.bf16.msra.mxu0 0
      %929 = vmatprep.subr.bf16.mxu0 0
      %930 = vmatpush1.bf16.msra.mxu0 0
      %931 = vmatprep.subr.bf16.mxu0 0
      %932 = vmatpush1.bf16.msra.mxu0 0
      %933 = vmatprep.subr.bf16.mxu0 0
      %934 = vmatpush1.bf16.msra.mxu0 0
      %935 = vmatprep.subr.bf16.mxu0 0
      %936 = vmatpush1.bf16.msra.mxu0 0
      %937 = vmatprep.mubr.bf16.mxu0 0
      %938 = vmatmul.mubr.bf16.gmra.mrb[0].mxu0 %v855
      %v939 = vpop.f32.mrb[0].mxu0
      %v940 = vadd.f32 0.0, %v939
      %v941 = vpop.f32.mrb[0].mxu0
      %v942 = vpop.f32.mrb[0].mxu0
      %v943 = vpop.f32.mrb[0].mxu0
      %944 = vdwg.mxu0
      %v945 = vadd.f32 %v833, %v940
      %v946 = vld [vmem:[%s726] sm:$0xc]
      %v947 = vld [vmem:[%s726 + $0x4] sm:$0x1]
      %s948 = scalar_lea.vmem [#allocation5], 512
      %v949 = vld [vmem:[%s948] sm:$0xf]
      %v950 = vld [vmem:[%s948 + $0x4] sm:$0xf]
      %v951 = vld [vmem:[%s948 + $0x8] sm:$0xf]
      %v952 = vld [vmem:[%s948 + $0xc] sm:$0xf]
      %v953 = vld [vmem:[%s948 + $0x10] sm:$0xf]
      %v954 = vld [vmem:[%s948 + $0x14] sm:$0xf]
      %v955 = vld [vmem:[%s948 + $0x18] sm:$0xf]
      %v956 = vld [vmem:[%s948 + $0x1c] sm:$0xf]
      %v957 = vld [vmem:[%s948 + $0x20] sm:$0xf]
      %v958 = vld [vmem:[%s948 + $0x24] sm:$0xf]
      %v959 = vld [vmem:[%s948 + $0x28] sm:$0xf]
      %v960 = vld [vmem:[%s948 + $0x2c] sm:$0xf]
      %v961 = vld [vmem:[%s948 + $0x30] sm:$0xf]
      %v962 = vld [vmem:[%s948 + $0x34] sm:$0xf]
      %v963 = vld [vmem:[%s948 + $0x38] sm:$0xf]
      %v964 = vld [vmem:[%s948 + $0x3c] sm:$0xf]
      %v967 = vunpack.c.l.b16 %v946
      %v968 = vunpack.c.l.b16 %v947
      %v969 = vpack.c.b16 %v968, %v967
      %v970 = vrot.slane %v969, 2
      %v988 = vunpack.c.l.b16 %v949
      %v989 = vunpack.c.l.b16 %v950
      %v990 = vunpack.c.l.b16 %v951
      %v991 = vunpack.c.l.b16 %v952
      %v992 = vunpack.c.l.b16 %v953
      %v993 = vunpack.c.l.b16 %v954
      %v994 = vunpack.c.l.b16 %v955
      %v995 = vunpack.c.l.b16 %v956
      %v996 = vunpack.c.l.b16 %v957
      %v997 = vunpack.c.l.b16 %v958
      %v998 = vunpack.c.l.b16 %v959
      %v999 = vunpack.c.l.b16 %v960
      %v1000 = vunpack.c.l.b16 %v961
      %v1001 = vunpack.c.l.b16 %v962
      %v1002 = vunpack.c.l.b16 %v963
      %v1003 = vunpack.c.l.b16 %v964
      %v1004 = vpack.c.b16 %v989, %v988
      %v1005 = vpack.c.b16 %v991, %v990
      %v1006 = vpack.c.b16 %v993, %v992
      %v1007 = vpack.c.b16 %v995, %v994
      %v1008 = vpack.c.b16 %v997, %v996
      %v1009 = vpack.c.b16 %v999, %v998
      %v1010 = vpack.c.b16 %v1001, %v1000
      %v1011 = vpack.c.b16 %v1003, %v1002
      %1020 = vmatprep.subr.bf16.mxu0 0
      %1021 = vmatpush1.bf16.msra.mxu0 %v1004
      %1022 = vmatprep.subr.bf16.mxu0 0
      %1023 = vmatpush1.bf16.msra.mxu0 %v1005
      %1024 = vmatprep.subr.bf16.mxu0 0
      %1025 = vmatpush1.bf16.msra.mxu0 %v1006
      %1026 = vmatprep.subr.bf16.mxu0 0
      %1027 = vmatpush1.bf16.msra.mxu0 %v1007
      %1028 = vmatprep.subr.bf16.mxu0 0
      %1029 = vmatpush1.bf16.msra.mxu0 %v1008
      %1030 = vmatprep.subr.bf16.mxu0 0
      %1031 = vmatpush1.bf16.msra.mxu0 %v1009
      %1032 = vmatprep.subr.bf16.mxu0 0
      %1033 = vmatpush1.bf16.msra.mxu0 %v1010
      %1034 = vmatprep.subr.bf16.mxu0 0
      %1035 = vmatpush1.bf16.msra.mxu0 %v1011
      %1036 = vmatprep.subr.bf16.mxu0 0
      %1037 = vmatpush1.bf16.msra.mxu0 0
      %1038 = vmatprep.subr.bf16.mxu0 0
      %1039 = vmatpush1.bf16.msra.mxu0 0
      %1040 = vmatprep.subr.bf16.mxu0 0
      %1041 = vmatpush1.bf16.msra.mxu0 0
      %1042 = vmatprep.subr.bf16.mxu0 0
      %1043 = vmatpush1.bf16.msra.mxu0 0
      %1044 = vmatprep.subr.bf16.mxu0 0
      %1045 = vmatpush1.bf16.msra.mxu0 0
      %1046 = vmatprep.subr.bf16.mxu0 0
      %1047 = vmatpush1.bf16.msra.mxu0 0
      %1048 = vmatprep.subr.bf16.mxu0 0
      %1049 = vmatpush1.bf16.msra.mxu0 0
      %1050 = vmatprep.subr.bf16.mxu0 0
      %1051 = vmatpush1.bf16.msra.mxu0 0
      %1052 = vmatprep.mubr.bf16.mxu0 0
      %1053 = vmatmul.mubr.bf16.gmra.mrb[0].mxu0 %v970
      %v1054 = vpop.f32.mrb[0].mxu0
      %v1055 = vadd.f32 0.0, %v1054
      %v1056 = vpop.f32.mrb[0].mxu0
      %v1057 = vpop.f32.mrb[0].mxu0
      %v1058 = vpop.f32.mrb[0].mxu0
      %1059 = vdwg.mxu0
      %v1060 = vadd.f32 %v945, %v1055
      %v1062 = vlaneseq
      %v1063 = vshrl.u32 %v1062, 7
      %v1064 = vsub.s32 0, %v1063
      %v1065 = vrot.slane %v44, %v1064
      %v1067 = vadd.f32 %v1060, %v1065
      %v1068 = vmax.f32 %v1067, 0.0
      %v1069 = vpack.c.bf16 %v1068, %v1068
      %s1070 = smul.addr %s46, 4
      %s1071 = scalar_lea.vmem [#allocation7], %s1070
      %1072 = vst [vmem:[%s1071] sm:$0x7] %v1069
    $region26: #{tpu_custom_call.1} parent=1 // loop_footer
      %s50 = sadd.s32 1, %s46
    $region27: #{tpu_custom_call.1} parent=1 // loop_footer_branch
      %45 = sbr.rel target = $region23
    $region28: #{tpu_custom_call.1} parent=1 // loop_exit
      _
    // Predicated region
    $region29: #{tpu_custom_call.1} parent=1 // pred_check
      _
    $region30: #{tpu_custom_call.1} parent=1 // pred_check_branch
      %1074 = sbr.rel (0) target = $region32
    $region31: #{tpu_custom_call.1} parent=1 // pred_region
      %s1076 = ssub.s32 384, 384
      %1077 = vsyncadd [#allocation4], %s1076
      %s1078 = sshll.u32 [#allocation7], 4
      %s1079 = int_to_ptr.vmem [resolvable:$true] %s1078
      %1084 = dma.vmem_to_hbm [thread:$0]  %s1079, 384, %s3, [#allocation4], 64, 64, 4
    $region32: #{tpu_custom_call.1} parent=1 // pred_fallthru
      _
    // Predicated region
    $region33: #{tpu_custom_call.1} parent=1 // pred_check
      _
    $region34: #{tpu_custom_call.1} parent=1 // pred_check_branch
      %1086 = sbr.rel (0) target = $region36
    $region35: #{tpu_custom_call.1} parent=1 // pred_region
      %1087 = dma.done [#allocation4], 384
    $region36: #{tpu_custom_call.1} parent=1 // pred_fallthru
      _
    %1088 = vsyncpa [#allocation3], 1
    %1089 = vsyncpa [#allocation6], 1
    %1090 = vsyncpa [#allocation4], 1

// kernel: conv2d_fused.1
$region0: #{conv2d_fused.1}
  #allocation0 [shape = 'u32[]', space=smem, size = 0x4, offset = 0x4, fixed_abs, tag = 'smem constant byte address 0x4 - core index']
  #allocation1 [shape = 'u32[144,128]{1,0:T(1,128)}', space=vmem, size = 0x12000, scoped, tag = 'internal scratch']
  #allocation2 [shape = 'f32[256,64]{1,0:T(8,128)}', space=vmem, size = 0x20000, scoped, tag = 'scratch operand']
  %s0 = inlined_call_operand.vmem [shape: bf16[512,147], index: 0, kind: input, shape index: {}]
  %s1 = inlined_call_operand.vmem [shape: bf16[147,64], index: 1, kind: input, shape index: {}]
  %s2 = inlined_call_operand.vmem [shape: f32[1,64], index: 2, kind: input, shape index: {}]
  %s3 = inlined_call_operand.hbm [shape: bf16[512,64], index: 3, kind: output, shape index: {}]
  %s4 = sld [smem:[#allocation0]]
  $region53: #{conv2d_fused.1} parent=0
    _
  %s6 = ssub.s32 1, %s4
  %s7 = scalar_select 0, %s6, %s4
  $region1: #{conv2d_fused.1} parent=0
    #allocation3 [shape = 'u8[131072]{0}', space=vmem, size = 0x20000, scoped, tag = 'output window, operand 0']
    #allocation4 [shape = 's32[2]{0}', space=sflag, size = 0x8, scoped, tag = 'scoped memory for conv2d_fused.1']
    %8 = vsyncpa [#allocation4], 0
    %s9 = scalar_lea.sflag [#allocation4], 1
    %10 = vsyncpa %s9, 0
    loop: start=0, step=1, limit=4
    $region2: #{conv2d_fused.1} parent=1 // loop_pre_header
      _
    $region3: #{conv2d_fused.1} parent=1 // loop_header
      %s12 = sphi 0, %s16
      %p13 = scmp.ge.s32.totalorder %s12, 4
      %s19 = sphi 0, %s38
      %s20 = sphi 0, %s34
      %s21 = sphi 0, %s30
      %s22 = sphi 0, %s19
      %s23 = sphi 0, %s20
      %s24 = sphi 0, %s21
      %s25 = sphi 0, %s22
      %s26 = sphi 0, %s23
      %s27 = sphi 0, %s24
      %s43 = sphi 0, %s45
      %s46 = sphi 0, %s43
      %s47 = sphi 0, %s46
      %s63 = sphi 0, %s47
      %s71 = sphi 0, %s73
      %s74 = sphi 0, %s71
      %s75 = sphi 0, %s74
      %s91 = sphi 0, %s75
      %s97 = sphi 0, %s99
      %s100 = sphi 0, %s97
      %s101 = sphi 0, %s100
      %s117 = sphi 0, %s101
      %s125 = sphi 0, %s127
      %s128 = sphi 0, %s125
      %s129 = sphi 0, %s128
      %s145 = sphi 0, %s129
    $region4: #{conv2d_fused.1} parent=1 // loop_header_branch
      %15 = sbr.rel (%p13) target = $region8
    $region5: #{conv2d_fused.1} parent=1 // loop_body
      %s17 = ssub.s32 %s12, 1
      %s18 = ssub.s32 %s12, 2
      %s28 = sadd.s32 1, %s21
      %p29 = scmp.ge.s32.totalorder %s28, 1
      %s30 = scalar_select %p29, 0, %s28
      %s31 = sadd.s32 1, %s20
      %s32 = scalar_select %p29, %s31, %s20
      %p33 = scmp.ge.s32.totalorder %s32, 1
      %s34 = scalar_select %p33, 0, %s32
      %s35 = sadd.s32 1, %s19
      %s36 = scalar_select %p33, %s35, %s19
      %p37 = scmp.ge.s32.totalorder %s36, 2
      %s38 = scalar_select %p37, 0, %s36
      %s39 = ssub.s32 %s19, %s38
      %s40 = ssub.s32 %s21, %s30
      %s41 = sor.u32 %s39, %s40
      %p42 = scmp.eq.s32.totalorder %s41, 0
      %s44 = sadd.s32 %s43, 1
      %s45 = scalar_select %p42, %s43, %s44
      %p48 = pneg %p42
      %p49 = scmp.eq.s32.totalorder %s12, 1
      %p50 = por %p48, %p49
      %p51 = scmp.ne.s32.totalorder %s43, %s46
      %p52 = scmp.eq.s32.totalorder %s12, 0
      %p53 = por %p51, %p52
      %p54 = scmp.ne.s32.totalorder %s43, %s46
      %p55 = scmp.eq.s32.totalorder %s17, 1
      %p56 = por %p54, %p55
      %p57 = scmp.ne.s32.totalorder %s46, %s47
      %p58 = scmp.eq.s32.totalorder %s17, 0
      %p59 = por %p57, %p58
      %p60 = scmp.ne.s32.totalorder %s46, %s47
      %p61 = scmp.eq.s32.totalorder %s18, 1
      %p62 = por %p60, %p61
      %p64 = scmp.ne.s32.totalorder %s47, %s63
      %p65 = scmp.eq.s32.totalorder %s18, 0
      %p66 = por %p64, %p65
      %s67 = ssub.s32 %s21, %s30
      %s68 = ssub.s32 %s20, %s34
      %s69 = sor.u32 %s67, %s68
      %p70 = scmp.eq.s32.totalorder %s69, 0
      %s72 = sadd.s32 %s71, 1
      %s73 = scalar_select %p70, %s71, %s72
      %p76 = pneg %p70
      %p77 = scmp.eq.s32.totalorder %s12, 1
      %p78 = por %p76, %p77
      %p79 = scmp.ne.s32.totalorder %s71, %s74
      %p80 = scmp.eq.s32.totalorder %s12, 0
      %p81 = por %p79, %p80
      %p82 = scmp.ne.s32.totalorder %s71, %s74
      %p83 = scmp.eq.s32.totalorder %s17, 1
      %p84 = por %p82, %p83
      %p85 = scmp.ne.s32.totalorder %s74, %s75
      %p86 = scmp.eq.s32.totalorder %s17, 0
      %p87 = por %p85, %p86
      %p88 = scmp.ne.s32.totalorder %s74, %s75
      %p89 = scmp.eq.s32.totalorder %s18, 1
      %p90 = por %p88, %p89
      %p92 = scmp.ne.s32.totalorder %s75, %s91
      %p93 = scmp.eq.s32.totalorder %s18, 0
      %p94 = por %p92, %p93
      %s95 = ssub.s32 %s20, %s34
      %p96 = scmp.eq.s32.totalorder %s95, 0
      %s98 = sadd.s32 %s97, 1
      %s99 = scalar_select %p96, %s97, %s98
      %p102 = pneg %p96
      %p103 = scmp.eq.s32.totalorder %s12, 1
      %p104 = por %p102, %p103
      %p105 = scmp.ne.s32.totalorder %s97, %s100
      %p106 = scmp.eq.s32.totalorder %s12, 0
      %p107 = por %p105, %p106
      %p108 = scmp.ne.s32.totalorder %s97, %s100
      %p109 = scmp.eq.s32.totalorder %s17, 1
      %p110 = por %p108, %p109
      %p111 = scmp.ne.s32.totalorder %s100, %s101
      %p112 = scmp.eq.s32.totalorder %s17, 0
      %p113 = por %p111, %p112
      %p114 = scmp.ne.s32.totalorder %s100, %s101
      %p115 = scmp.eq.s32.totalorder %s18, 1
      %p116 = por %p114, %p115
      %p118 = scmp.ne.s32.totalorder %s101, %s117
      %p119 = scmp.eq.s32.totalorder %s18, 0
      %p120 = por %p118, %p119
      %s121 = ssub.s32 %s19, %s38
      %s122 = ssub.s32 %s20, %s34
      %s123 = sor.u32 %s121, %s122
      %p124 = scmp.eq.s32.totalorder %s123, 0
      %s126 = sadd.s32 %s125, 1
      %s127 = scalar_select %p124, %s125, %s126
      %p130 = pneg %p124
      %p131 = scmp.eq.s32.totalorder %s12, 1
      %p132 = por %p130, %p131
      %p133 = scmp.ne.s32.totalorder %s125, %s128
      %p134 = scmp.eq.s32.totalorder %s12, 0
      %p135 = por %p133, %p134
      %p136 = scmp.ne.s32.totalorder %s125, %s128
      %p137 = scmp.eq.s32.totalorder %s17, 1
      %p138 = por %p136, %p137
      %p139 = scmp.ne.s32.totalorder %s128, %s129
      %p140 = scmp.eq.s32.totalorder %s17, 0
      %p141 = por %p139, %p140
      %p142 = scmp.ne.s32.totalorder %s128, %s129
      %p143 = scmp.eq.s32.totalorder %s18, 1
      %p144 = por %p142, %p143
      %p146 = scmp.ne.s32.totalorder %s129, %s145
      %p147 = scmp.eq.s32.totalorder %s18, 0
      %p148 = por %p146, %p147
      %p149 = scmp.le.s32.totalorder 1, %s12
      %p150 = scmp.lt.s32.totalorder %s12, 3
      %p151 = pnand %p149, %p150
      %p152 = pneg %p151
      // Predicated region
      $region9: #{conv2d_fused.1} parent=5 // pred_check
        _
      $region10: #{conv2d_fused.1} parent=5 // pred_check_branch
        %154 = sbr.rel (%p151) target = $region12
      $region11: #{conv2d_fused.1} parent=5 // pred_region
        %s155 = ssub.s32 %s12, 1
        // Predicated region
        $region13: #{conv2d_fused.1} parent=11 // pred_check
          %p156 = pneg %p87
        $region14: #{conv2d_fused.1} parent=11 // pred_check_branch
          %158 = sbr.rel (%p156) target = $region16
        $region15: #{conv2d_fused.1} parent=11 // pred_region
          %s159 = smul.u32 19, %s24
          %p160 = scmp.lt.s32.totalorder %s159, 18
          %s161 = scalar_select %p160, %s159, 18
          %p162 = scmp.lt.s32.totalorder %s23, 0
          %s163 = scalar_select %p162, %s23, 0
          %s164 = sadd.s32 %s163, %s161
          %s165 = smul.addr %s164, 4
          %s166 = scalar_lea.vmem %s1, %s165
          %s167 = smul.u32 19, %s24
        $region16: #{conv2d_fused.1} parent=11 // pred_fallthru
          _
        // Predicated region
        $region17: #{conv2d_fused.1} parent=11 // pred_check
          %p168 = pneg %p113
        $region18: #{conv2d_fused.1} parent=11 // pred_check_branch
          %170 = sbr.rel (%p168) target = $region20
        $region19: #{conv2d_fused.1} parent=11 // pred_region
          %p171 = scmp.lt.s32.totalorder %s23, 0
          %s172 = scalar_select %p171, %s23, 0
          %s173 = scalar_lea.vmem %s2, %s172
        $region20: #{conv2d_fused.1} parent=11 // pred_fallthru
          _
      $region12: #{conv2d_fused.1} parent=5 // pred_fallthru
        _
      %p174 = scmp.lt.s32.totalorder %s12, 2
      // Predicated region
      $region21: #{conv2d_fused.1} parent=5 // pred_check
        %p175 = pneg %p174
      $region22: #{conv2d_fused.1} parent=5 // pred_check_branch
        %177 = sbr.rel (%p175) target = $region24
      $region23: #{conv2d_fused.1} parent=5 // pred_region
        // Predicated region
        $region25: #{conv2d_fused.1} parent=23 // pred_check
          %p178 = pneg %p53
        $region26: #{conv2d_fused.1} parent=23 // pred_check_branch
          %180 = sbr.rel (%p178) target = $region28
        $region27: #{conv2d_fused.1} parent=23 // pred_region
          %s181 = smul.u32 32, %s19
          %s182 = smul.u32 2, %s21
          %p183 = scmp.lt.s32.totalorder %s181, 63
          %s184 = scalar_select %p183, %s181, 63
          %p185 = scmp.lt.s32.totalorder %s182, 1
          %s186 = scalar_select %p185, %s182, 1
          %s187 = smul.addr %s184, 2
          %s188 = sadd.s32 %s186, %s187
          %s189 = smul.addr %s188, 4
          %s190 = scalar_lea.vmem %s0, %s189
          %s191 = smul.u32 32, %s19
          %s192 = smul.u32 2, %s21
        $region28: #{conv2d_fused.1} parent=23 // pred_fallthru
          _
      $region24: #{conv2d_fused.1} parent=5 // pred_fallthru
        _
      %p193 = scmp.le.s32.totalorder 1, %s12
      %p194 = scmp.lt.s32.totalorder %s12, 3
      %p195 = pnand %p193, %p194
      %p196 = pneg %p195
      // Predicated region
      $region29: #{conv2d_fused.1} parent=5 // pred_check
        _
      $region30: #{conv2d_fused.1} parent=5 // pred_check_branch
        %198 = sbr.rel (%p195) target = $region32
      $region31: #{conv2d_fused.1} parent=5 // pred_region
        %s199 = ssub.s32 %s12, 1
        %s200 = smul.u32 32, %s22
        %s201 = smul.u32 2, %s24
        %p202 = scmp.lt.s32.totalorder %s200, 63
        %s203 = scalar_select %p202, %s200, 63
        %p204 = scmp.lt.s32.totalorder %s201, 1
        %s205 = scalar_select %p204, %s201, 1
        %s206 = smul.addr %s203, 2
        %s207 = sadd.s32 %s205, %s206
        %s208 = smul.addr %s207, 4
        %s209 = scalar_lea.vmem %s0, %s208
        %p210 = pneg %p59
        %p211 = pneg %p56
        %s212 = smul.u32 19, %s24
        %p213 = scmp.lt.s32.totalorder %s212, 18
        %s214 = scalar_select %p213, %s212, 18
        %p215 = scmp.lt.s32.totalorder %s23, 0
        %s216 = scalar_select %p215, %s23, 0
        %s217 = sadd.s32 %s216, %s214
        %s218 = smul.addr %s217, 4
        %s219 = scalar_lea.vmem %s1, %s218
        %p220 = pneg %p87
        %p221 = pneg %p84
        %p222 = scmp.lt.s32.totalorder %s23, 0
        %s223 = scalar_select %p222, %s23, 0
        %s224 = scalar_lea.vmem %s2, %s223
        %p225 = pneg %p113
        %p226 = pneg %p110
        %p227 = pneg %p141
        %p228 = pneg %p138
        %s229 = sand.u32 %s128, 1
        %s230 = scalar_lea.sflag [#allocation4], %s229
        %s231 = sand.u32 %s128, 1
        %s232 = smul.addr %s231, 128
        %s233 = scalar_lea.vmem [#allocation3], %s232
        %s234 = smul.u32 32, %s22
        %s235 = smul.u32 2, %s24
        %p236 = scmp.lt.s32.totalorder %s234, 63
        %s237 = scalar_select %p236, %s234, 63
        %p238 = scmp.lt.s32.totalorder %s235, 1
        %s239 = scalar_select %p238, %s235, 1
        %s240 = smul.addr %s237, 2
        %s241 = sadd.s32 %s239, %s240
        %s242 = smul.addr %s241, 4
        %s243 = scalar_lea.vmem %s0, %s242
        %s244 = smul.u32 32, %s22
        %s245 = smul.u32 2, %s24
        %s246 = smul.u32 19, %s24
        %p247 = scmp.lt.s32.totalorder %s246, 18
        %s248 = scalar_select %p247, %s246, 18
        %p249 = scmp.lt.s32.totalorder %s23, 0
        %s250 = scalar_select %p249, %s23, 0
        %s251 = sadd.s32 %s250, %s248
        %s252 = smul.addr %s251, 4
        %s253 = scalar_lea.vmem %s1, %s252
        %s254 = smul.u32 19, %s24
        %p255 = scmp.lt.s32.totalorder %s23, 0
        %s256 = scalar_select %p255, %s23, 0
        %s257 = scalar_lea.vmem %s2, %s256
        %s258 = smul.u32 32, %s22
        %p260 = scmp.eq.s32.totalorder %s24, 0
        // Predicated region
        $region33: #{conv2d_fused.1} parent=31 // pred_check
          %p261 = pneg %p260
        $region34: #{conv2d_fused.1} parent=31 // pred_check_branch
          %263 = sbr.rel (%p261) target = $region36
        $region35: #{conv2d_fused.1} parent=31 // pred_region
          %vm264 = vcmask 523264
          %265 = vst.msk [vmem:[#allocation2] sm:$0xff] %vm264, 0.0
          %266 = vst.msk [vmem:[#allocation2 + $0x8] sm:$0xff] %vm264, 0.0
          %267 = vst.msk [vmem:[#allocation2 + $0x10] sm:$0xff] %vm264, 0.0
          %268 = vst.msk [vmem:[#allocation2 + $0x18] sm:$0xff] %vm264, 0.0
          %269 = vst.msk [vmem:[#allocation2 + $0x20] sm:$0xff] %vm264, 0.0
          %270 = vst.msk [vmem:[#allocation2 + $0x28] sm:$0xff] %vm264, 0.0
          %271 = vst.msk [vmem:[#allocation2 + $0x30] sm:$0xff] %vm264, 0.0
          %272 = vst.msk [vmem:[#allocation2 + $0x38] sm:$0xff] %vm264, 0.0
          %273 = vst.msk [vmem:[#allocation2 + $0x40] sm:$0xff] %vm264, 0.0
          %274 = vst.msk [vmem:[#allocation2 + $0x48] sm:$0xff] %vm264, 0.0
          %275 = vst.msk [vmem:[#allocation2 + $0x50] sm:$0xff] %vm264, 0.0
          %276 = vst.msk [vmem:[#allocation2 + $0x58] sm:$0xff] %vm264, 0.0
          %277 = vst.msk [vmem:[#allocation2 + $0x60] sm:$0xff] %vm264, 0.0
          %278 = vst.msk [vmem:[#allocation2 + $0x68] sm:$0xff] %vm264, 0.0
          %279 = vst.msk [vmem:[#allocation2 + $0x70] sm:$0xff] %vm264, 0.0
          %280 = vst.msk [vmem:[#allocation2 + $0x78] sm:$0xff] %vm264, 0.0
          %281 = vst.msk [vmem:[#allocation2 + $0x80] sm:$0xff] %vm264, 0.0
          %282 = vst.msk [vmem:[#allocation2 + $0x88] sm:$0xff] %vm264, 0.0
          %283 = vst.msk [vmem:[#allocation2 + $0x90] sm:$0xff] %vm264, 0.0
          %284 = vst.msk [vmem:[#allocation2 + $0x98] sm:$0xff] %vm264, 0.0
          %285 = vst.msk [vmem:[#allocation2 + $0xa0] sm:$0xff] %vm264, 0.0
          %286 = vst.msk [vmem:[#allocation2 + $0xa8] sm:$0xff] %vm264, 0.0
          %287 = vst.msk [vmem:[#allocation2 + $0xb0] sm:$0xff] %vm264, 0.0
          %288 = vst.msk [vmem:[#allocation2 + $0xb8] sm:$0xff] %vm264, 0.0
          %289 = vst.msk [vmem:[#allocation2 + $0xc0] sm:$0xff] %vm264, 0.0
          %290 = vst.msk [vmem:[#allocation2 + $0xc8] sm:$0xff] %vm264, 0.0
          %291 = vst.msk [vmem:[#allocation2 + $0xd0] sm:$0xff] %vm264, 0.0
          %292 = vst.msk [vmem:[#allocation2 + $0xd8] sm:$0xff] %vm264, 0.0
          %293 = vst.msk [vmem:[#allocation2 + $0xe0] sm:$0xff] %vm264, 0.0
          %294 = vst.msk [vmem:[#allocation2 + $0xe8] sm:$0xff] %vm264, 0.0
          %295 = vst.msk [vmem:[#allocation2 + $0xf0] sm:$0xff] %vm264, 0.0
          %296 = vst.msk [vmem:[#allocation2 + $0xf8] sm:$0xff] %vm264, 0.0
        $region36: #{conv2d_fused.1} parent=31 // pred_fallthru
          _
        %v297 = vld [vmem:[#allocation2] sm:$0xff]
        %v298 = vld [vmem:[#allocation2 + $0x8] sm:$0xff]
        %v299 = vld [vmem:[#allocation2 + $0x10] sm:$0xff]
        %v300 = vld [vmem:[#allocation2 + $0x18] sm:$0xff]
        %v301 = vld [vmem:[#allocation2 + $0x20] sm:$0xff]
        %v302 = vld [vmem:[#allocation2 + $0x28] sm:$0xff]
        %v303 = vld [vmem:[#allocation2 + $0x30] sm:$0xff]
        %v304 = vld [vmem:[#allocation2 + $0x38] sm:$0xff]
        %v305 = vld [vmem:[#allocation2 + $0x40] sm:$0xff]
        %v306 = vld [vmem:[#allocation2 + $0x48] sm:$0xff]
        %v307 = vld [vmem:[#allocation2 + $0x50] sm:$0xff]
        %v308 = vld [vmem:[#allocation2 + $0x58] sm:$0xff]
        %v309 = vld [vmem:[#allocation2 + $0x60] sm:$0xff]
        %v310 = vld [vmem:[#allocation2 + $0x68] sm:$0xff]
        %v311 = vld [vmem:[#allocation2 + $0x70] sm:$0xff]
        %v312 = vld [vmem:[#allocation2 + $0x78] sm:$0xff]
        %v313 = vld [vmem:[#allocation2 + $0x80] sm:$0xff]
        %v314 = vld [vmem:[#allocation2 + $0x88] sm:$0xff]
        %v315 = vld [vmem:[#allocation2 + $0x90] sm:$0xff]
        %v316 = vld [vmem:[#allocation2 + $0x98] sm:$0xff]
        %v317 = vld [vmem:[#allocation2 + $0xa0] sm:$0xff]
        %v318 = vld [vmem:[#allocation2 + $0xa8] sm:$0xff]
        %v319 = vld [vmem:[#allocation2 + $0xb0] sm:$0xff]
        %v320 = vld [vmem:[#allocation2 + $0xb8] sm:$0xff]
        %v321 = vld [vmem:[#allocation2 + $0xc0] sm:$0xff]
        %v322 = vld [vmem:[#allocation2 + $0xc8] sm:$0xff]
        %v323 = vld [vmem:[#allocation2 + $0xd0] sm:$0xff]
        %v324 = vld [vmem:[#allocation2 + $0xd8] sm:$0xff]
        %v325 = vld [vmem:[#allocation2 + $0xe0] sm:$0xff]
        %v326 = vld [vmem:[#allocation2 + $0xe8] sm:$0xff]
        %v327 = vld [vmem:[#allocation2 + $0xf0] sm:$0xff]
        %v328 = vld [vmem:[#allocation2 + $0xf8] sm:$0xff]
        %v329 = vld [vmem:[%s243] sm:$0xff]
        %v330 = vld [vmem:[%s243 + $0x8] sm:$0xff]
        %v331 = vld [vmem:[%s243 + $0x10] sm:$0xff]
        %v332 = vld [vmem:[%s243 + $0x18] sm:$0xff]
        %v333 = vld [vmem:[%s243 + $0x20] sm:$0xff]
        %v334 = vld [vmem:[%s243 + $0x28] sm:$0xff]
        %v335 = vld [vmem:[%s243 + $0x30] sm:$0xff]
        %v336 = vld [vmem:[%s243 + $0x38] sm:$0xff]
        %v337 = vld [vmem:[%s243 + $0x40] sm:$0xff]
        %v338 = vld [vmem:[%s243 + $0x48] sm:$0xff]
        %v339 = vld [vmem:[%s243 + $0x50] sm:$0xff]
        %v340 = vld [vmem:[%s243 + $0x58] sm:$0xff]
        %v341 = vld [vmem:[%s243 + $0x60] sm:$0xff]
        %v342 = vld [vmem:[%s243 + $0x68] sm:$0xff]
        %v343 = vld [vmem:[%s243 + $0x70] sm:$0xff]
        %v344 = vld [vmem:[%s243 + $0x78] sm:$0xff]
        %v345 = vld [vmem:[%s243 + $0x80] sm:$0xff]
        %v346 = vld [vmem:[%s243 + $0x88] sm:$0xff]
        %v347 = vld [vmem:[%s243 + $0x90] sm:$0xff]
        %v348 = vld [vmem:[%s243 + $0x98] sm:$0xff]
        %v349 = vld [vmem:[%s243 + $0xa0] sm:$0xff]
        %v350 = vld [vmem:[%s243 + $0xa8] sm:$0xff]
        %v351 = vld [vmem:[%s243 + $0xb0] sm:$0xff]
        %v352 = vld [vmem:[%s243 + $0xb8] sm:$0xff]
        %v353 = vld [vmem:[%s243 + $0xc0] sm:$0xff]
        %v354 = vld [vmem:[%s243 + $0xc8] sm:$0xff]
        %v355 = vld [vmem:[%s243 + $0xd0] sm:$0xff]
        %v356 = vld [vmem:[%s243 + $0xd8] sm:$0xff]
        %v357 = vld [vmem:[%s243 + $0xe0] sm:$0xff]
        %v358 = vld [vmem:[%s243 + $0xe8] sm:$0xff]
        %v359 = vld [vmem:[%s243 + $0xf0] sm:$0xff]
        %v360 = vld [vmem:[%s243 + $0xf8] sm:$0xff]
        %v361 = vld [vmem:[%s253] sm:$0xf]
        %v362 = vld [vmem:[%s253 + $0x4] sm:$0xf]
        %v363 = vld [vmem:[%s253 + $0x8] sm:$0xf]
        %v364 = vld [vmem:[%s253 + $0xc] sm:$0xf]
        %v365 = vld [vmem:[%s253 + $0x10] sm:$0xf]
        %v366 = vld [vmem:[%s253 + $0x14] sm:$0xf]
        %v367 = vld [vmem:[%s253 + $0x18] sm:$0xf]
        %v368 = vld [vmem:[%s253 + $0x1c] sm:$0xf]
        %v369 = vld [vmem:[%s253 + $0x20] sm:$0xf]
        %v370 = vld [vmem:[%s253 + $0x24] sm:$0xf]
        %v371 = vld [vmem:[%s253 + $0x28] sm:$0xf]
        %v372 = vld [vmem:[%s253 + $0x2c] sm:$0xf]
        %v373 = vld [vmem:[%s253 + $0x30] sm:$0xf]
        %v374 = vld [vmem:[%s253 + $0x34] sm:$0xf]
        %v375 = vld [vmem:[%s253 + $0x38] sm:$0xf]
        %v376 = vld [vmem:[%s253 + $0x3c] sm:$0xf]
        %v377 = vld [vmem:[%s253 + $0x40] sm:$0xf]
        %v378 = vld [vmem:[%s253 + $0x44] sm:$0xf]
        %v379 = vld [vmem:[%s253 + $0x48] sm:$0x3]
        %v412 = vunpack.c.l.b16 %v329
        %v413 = vunpack.c.h.b16 %v329
        %v414 = vunpack.c.l.b16 %v330
        %v415 = vunpack.c.h.b16 %v330
        %v416 = vunpack.c.l.b16 %v331
        %v417 = vunpack.c.h.b16 %v331
        %v418 = vunpack.c.l.b16 %v332
        %v419 = vunpack.c.h.b16 %v332
        %v420 = vunpack.c.l.b16 %v333
        %v421 = vunpack.c.h.b16 %v333
        %v422 = vunpack.c.l.b16 %v334
        %v423 = vunpack.c.h.b16 %v334
        %v424 = vunpack.c.l.b16 %v335
        %v425 = vunpack.c.h.b16 %v335
        %v426 = vunpack.c.l.b16 %v336
        %v427 = vunpack.c.h.b16 %v336
        %v428 = vunpack.c.l.b16 %v337
        %v429 = vunpack.c.h.b16 %v337
        %v430 = vunpack.c.l.b16 %v338
        %v431 = vunpack.c.h.b16 %v338
        %v432 = vunpack.c.l.b16 %v339
        %v433 = vunpack.c.h.b16 %v339
        %v434 = vunpack.c.l.b16 %v340
        %v435 = vunpack.c.h.b16 %v340
        %v436 = vunpack.c.l.b16 %v341
        %v437 = vunpack.c.h.b16 %v341
        %v438 = vunpack.c.l.b16 %v342
        %v439 = vunpack.c.h.b16 %v342
        %v440 = vunpack.c.l.b16 %v343
        %v441 = vunpack.c.h.b16 %v343
        %v442 = vunpack.c.l.b16 %v344
        %v443 = vunpack.c.h.b16 %v344
        %v444 = vunpack.c.l.b16 %v345
        %v445 = vunpack.c.h.b16 %v345
        %v446 = vunpack.c.l.b16 %v346
        %v447 = vunpack.c.h.b16 %v346
        %v448 = vunpack.c.l.b16 %v347
        %v449 = vunpack.c.h.b16 %v347
        %v450 = vunpack.c.l.b16 %v348
        %v451 = vunpack.c.h.b16 %v348
        %v452 = vunpack.c.l.b16 %v349
        %v453 = vunpack.c.h.b16 %v349
        %v454 = vunpack.c.l.b16 %v350
        %v455 = vunpack.c.h.b16 %v350
        %v456 = vunpack.c.l.b16 %v351
        %v457 = vunpack.c.h.b16 %v351
        %v458 = vunpack.c.l.b16 %v352
        %v459 = vunpack.c.h.b16 %v352
        %v460 = vunpack.c.l.b16 %v353
        %v461 = vunpack.c.h.b16 %v353
        %v462 = vunpack.c.l.b16 %v354
        %v463 = vunpack.c.h.b16 %v354
        %v464 = vunpack.c.l.b16 %v355
        %v465 = vunpack.c.h.b16 %v355
        %v466 = vunpack.c.l.b16 %v356
        %v467 = vunpack.c.h.b16 %v356
        %v468 = vunpack.c.l.b16 %v357
        %v469 = vunpack.c.h.b16 %v357
        %v470 = vunpack.c.l.b16 %v358
        %v471 = vunpack.c.h.b16 %v358
        %v472 = vunpack.c.l.b16 %v359
        %v473 = vunpack.c.h.b16 %v359
        %v474 = vunpack.c.l.b16 %v360
        %v475 = vunpack.c.h.b16 %v360
        %v476 = vpack.c.b16 %v414, %v412
        %v477 = vpack.c.b16 %v415, %v413
        %v478 = vpack.c.b16 %v418, %v416
        %v479 = vpack.c.b16 %v419, %v417
        %v480 = vpack.c.b16 %v422, %v420
        %v481 = vpack.c.b16 %v423, %v421
        %v482 = vpack.c.b16 %v426, %v424
        %v483 = vpack.c.b16 %v427, %v425
        %v484 = vpack.c.b16 %v430, %v428
        %v485 = vpack.c.b16 %v431, %v429
        %v486 = vpack.c.b16 %v434, %v432
        %v487 = vpack.c.b16 %v435, %v433
        %v488 = vpack.c.b16 %v438, %v436
        %v489 = vpack.c.b16 %v439, %v437
        %v490 = vpack.c.b16 %v442, %v440
        %v491 = vpack.c.b16 %v443, %v441
        %v492 = vpack.c.b16 %v446, %v444
        %v493 = vpack.c.b16 %v447, %v445
        %v494 = vpack.c.b16 %v450, %v448
        %v495 = vpack.c.b16 %v451, %v449
        %v496 = vpack.c.b16 %v454, %v452
        %v497 = vpack.c.b16 %v455, %v453
        %v498 = vpack.c.b16 %v458, %v456
        %v499 = vpack.c.b16 %v459, %v457
        %v500 = vpack.c.b16 %v462, %v460
        %v501 = vpack.c.b16 %v463, %v461
        %v502 = vpack.c.b16 %v466, %v464
        %v503 = vpack.c.b16 %v467, %v465
        %v504 = vpack.c.b16 %v470, %v468
        %v505 = vpack.c.b16 %v471, %v469
        %v506 = vpack.c.b16 %v474, %v472
        %v507 = vpack.c.b16 %v475, %v473
        %v543 = vunpack.c.l.b16 %v361
        %v544 = vunpack.c.l.b16 %v362
        %v545 = vunpack.c.l.b16 %v363
        %v546 = vunpack.c.l.b16 %v364
        %v547 = vunpack.c.l.b16 %v365
        %v548 = vunpack.c.l.b16 %v366
        %v549 = vunpack.c.l.b16 %v367
        %v550 = vunpack.c.l.b16 %v368
        %v551 = vunpack.c.l.b16 %v369
        %v552 = vunpack.c.l.b16 %v370
        %v553 = vunpack.c.l.b16 %v371
        %v554 = vunpack.c.l.b16 %v372
        %v555 = vunpack.c.l.b16 %v373
        %v556 = vunpack.c.l.b16 %v374
        %v557 = vunpack.c.l.b16 %v375
        %v558 = vunpack.c.l.b16 %v376
        %v559 = vunpack.c.l.b16 %v377
        %v560 = vunpack.c.l.b16 %v378
        %v561 = vunpack.c.l.b16 %v379
        %v562 = vpack.c.b16 %v544, %v543
        %v563 = vpack.c.b16 %v546, %v545
        %v564 = vpack.c.b16 %v548, %v547
        %v565 = vpack.c.b16 %v550, %v549
        %v566 = vpack.c.b16 %v552, %v551
        %v567 = vpack.c.b16 %v554, %v553
        %v568 = vpack.c.b16 %v556, %v555
        %v569 = vpack.c.b16 %v558, %v557
        %v570 = vpack.c.b16 %v560, %v559
        %v571 = vpack.c.b16 %v561, %v561
        %vm581 = vcmask 154624
        %v583 = vsel %vm581, %v477, 0
        %v586 = vsel %vm581, %v479, 0
        %v589 = vsel %vm581, %v481, 0
        %v592 = vsel %vm581, %v483, 0
        %v595 = vsel %vm581, %v485, 0
        %v598 = vsel %vm581, %v487, 0
        %v601 = vsel %vm581, %v489, 0
        %v604 = vsel %vm581, %v491, 0
        %v607 = vsel %vm581, %v493, 0
        %v610 = vsel %vm581, %v495, 0
        %v613 = vsel %vm581, %v497, 0
        %v616 = vsel %vm581, %v499, 0
        %v619 = vsel %vm581, %v501, 0
        %v622 = vsel %vm581, %v503, 0
        %v625 = vsel %vm581, %v505, 0
        %v628 = vsel %vm581, %v507, 0
        %vm630 = vcmask 1040384
        %vm631 = vcmask 1041408
        %v632 = vsel %vm630, 4294967295, 65535
        %v633 = vsel %vm631, %v632, 0
        %v635 = vand.u32 %v571, %v633
        %637 = vmatprep.subr.bf16.mxu0 0
        %638 = vmatpush1.bf16.msra.mxu0 %v562
        %639 = vmatprep.subr.bf16.mxu0 0
        %640 = vmatpush1.bf16.msra.mxu0 %v563
        %641 = vmatprep.subr.bf16.mxu0 0
        %642 = vmatpush1.bf16.msra.mxu0 %v564
        %643 = vmatprep.subr.bf16.mxu0 0
        %644 = vmatpush1.bf16.msra.mxu0 %v565
        %645 = vmatprep.subr.bf16.mxu0 0
        %646 = vmatpush1.bf16.msra.mxu0 %v566
        %647 = vmatprep.subr.bf16.mxu0 0
        %648 = vmatpush1.bf16.msra.mxu0 %v567
        %649 = vmatprep.subr.bf16.mxu0 0
        %650 = vmatpush1.bf16.msra.mxu0 %v568
        %651 = vmatprep.subr.bf16.mxu0 0
        %652 = vmatpush1.bf16.msra.mxu0 %v569
        %653 = vmatprep.subr.bf16.mxu0 0
        %654 = vmatpush1.bf16.msra.mxu0 %v570
        %655 = vmatprep.subr.bf16.mxu0 0
        %656 = vmatpush1.bf16.msra.mxu0 %v635
        %657 = vmatprep.subr.bf16.mxu0 0
        %658 = vmatpush1.bf16.msra.mxu0 0
        %659 = vmatprep.subr.bf16.mxu0 0
        %660 = vmatpush1.bf16.msra.mxu0 0
        %661 = vmatprep.subr.bf16.mxu0 0
        %662 = vmatpush1.bf16.msra.mxu0 0
        %663 = vmatprep.subr.bf16.mxu0 0
        %664 = vmatpush1.bf16.msra.mxu0 0
        %665 = vmatprep.subr.bf16.mxu0 0
        %666 = vmatpush1.bf16.msra.mxu0 0
        %667 = vmatprep.subr.bf16.mxu0 0
        %668 = vmatpush1.bf16.msra.mxu0 0
        %669 = vmatprep.mubr.bf16.mxu0 %v583
        %670 = vmatmul.mubr.bf16.gmra.mrb[0].mxu0 %v476
        %v671 = vpop.f32.mrb[0].mxu0
        %v672 = vadd.f32 0.0, %v671
        %v673 = vpop.f32.mrb[0].mxu0
        %v674 = vpop.f32.mrb[0].mxu0
        %v675 = vadd.f32 0.0, %v674
        %v676 = vpop.f32.mrb[0].mxu0
        %677 = vmatprep.mubr.bf16.mxu0 %v586
        %678 = vmatmul.mubr.bf16.gmra.mrb[0].mxu0 %v478
        %v679 = vpop.f32.mrb[0].mxu0
        %v680 = vadd.f32 0.0, %v679
        %v681 = vpop.f32.mrb[0].mxu0
        %v682 = vpop.f32.mrb[0].mxu0
        %v683 = vadd.f32 0.0, %v682
        %v684 = vpop.f32.mrb[0].mxu0
        %685 = vmatprep.mubr.bf16.mxu0 %v589
        %686 = vmatmul.mubr.bf16.gmra.mrb[0].mxu0 %v480
        %v687 = vpop.f32.mrb[0].mxu0
        %v688 = vadd.f32 0.0, %v687
        %v689 = vpop.f32.mrb[0].mxu0
        %v690 = vpop.f32.mrb[0].mxu0
        %v691 = vadd.f32 0.0, %v690
        %v692 = vpop.f32.mrb[0].mxu0
        %693 = vmatprep.mubr.bf16.mxu0 %v592
        %694 = vmatmul.mubr.bf16.gmra.mrb[0].mxu0 %v482
        %v695 = vpop.f32.mrb[0].mxu0
        %v696 = vadd.f32 0.0, %v695
        %v697 = vpop.f32.mrb[0].mxu0
        %v698 = vpop.f32.mrb[0].mxu0
        %v699 = vadd.f32 0.0, %v698
        %v700 = vpop.f32.mrb[0].mxu0
        %701 = vmatprep.mubr.bf16.mxu0 %v595
        %702 = vmatmul.mubr.bf16.gmra.mrb[0].mxu0 %v484
        %v703 = vpop.f32.mrb[0].mxu0
        %v704 = vadd.f32 0.0, %v703
        %v705 = vpop.f32.mrb[0].mxu0
        %v706 = vpop.f32.mrb[0].mxu0
        %v707 = vadd.f32 0.0, %v706
        %v708 = vpop.f32.mrb[0].mxu0
        %709 = vmatprep.mubr.bf16.mxu0 %v598
        %710 = vmatmul.mubr.bf16.gmra.mrb[0].mxu0 %v486
        %v711 = vpop.f32.mrb[0].mxu0
        %v712 = vadd.f32 0.0, %v711
        %v713 = vpop.f32.mrb[0].mxu0
        %v714 = vpop.f32.mrb[0].mxu0
        %v715 = vadd.f32 0.0, %v714
        %v716 = vpop.f32.mrb[0].mxu0
        %717 = vmatprep.mubr.bf16.mxu0 %v601
        %718 = vmatmul.mubr.bf16.gmra.mrb[0].mxu0 %v488
        %v719 = vpop.f32.mrb[0].mxu0
        %v720 = vadd.f32 0.0, %v719
        %v721 = vpop.f32.mrb[0].mxu0
        %v722 = vpop.f32.mrb[0].mxu0
        %v723 = vadd.f32 0.0, %v722
        %v724 = vpop.f32.mrb[0].mxu0
        %725 = vmatprep.mubr.bf16.mxu0 %v604
        %726 = vmatmul.mubr.bf16.gmra.mrb[0].mxu0 %v490
        %v727 = vpop.f32.mrb[0].mxu0
        %v728 = vadd.f32 0.0, %v727
        %v729 = vpop.f32.mrb[0].mxu0
        %v730 = vpop.f32.mrb[0].mxu0
        %v731 = vadd.f32 0.0, %v730
        %v732 = vpop.f32.mrb[0].mxu0
        %733 = vmatprep.mubr.bf16.mxu0 %v607
        %734 = vmatmul.mubr.bf16.gmra.mrb[0].mxu0 %v492
        %v735 = vpop.f32.mrb[0].mxu0
        %v736 = vadd.f32 0.0, %v735
        %v737 = vpop.f32.mrb[0].mxu0
        %v738 = vpop.f32.mrb[0].mxu0
        %v739 = vadd.f32 0.0, %v738
        %v740 = vpop.f32.mrb[0].mxu0
        %741 = vmatprep.mubr.bf16.mxu0 %v610
        %742 = vmatmul.mubr.bf16.gmra.mrb[0].mxu0 %v494
        %v743 = vpop.f32.mrb[0].mxu0
        %v744 = vadd.f32 0.0, %v743
        %v745 = vpop.f32.mrb[0].mxu0
        %v746 = vpop.f32.mrb[0].mxu0
        %v747 = vadd.f32 0.0, %v746
        %v748 = vpop.f32.mrb[0].mxu0
        %749 = vmatprep.mubr.bf16.mxu0 %v613
        %750 = vmatmul.mubr.bf16.gmra.mrb[0].mxu0 %v496
        %v751 = vpop.f32.mrb[0].mxu0
        %v752 = vadd.f32 0.0, %v751
        %v753 = vpop.f32.mrb[0].mxu0
        %v754 = vpop.f32.mrb[0].mxu0
        %v755 = vadd.f32 0.0, %v754
        %v756 = vpop.f32.mrb[0].mxu0
        %757 = vmatprep.mubr.bf16.mxu0 %v616
        %758 = vmatmul.mubr.bf16.gmra.mrb[0].mxu0 %v498
        %v759 = vpop.f32.mrb[0].mxu0
        %v760 = vadd.f32 0.0, %v759
        %v761 = vpop.f32.mrb[0].mxu0
        %v762 = vpop.f32.mrb[0].mxu0
        %v763 = vadd.f32 0.0, %v762
        %v764 = vpop.f32.mrb[0].mxu0
        %765 = vmatprep.mubr.bf16.mxu0 %v619
        %766 = vmatmul.mubr.bf16.gmra.mrb[0].mxu0 %v500
        %v767 = vpop.f32.mrb[0].mxu0
        %v768 = vadd.f32 0.0, %v767
        %v769 = vpop.f32.mrb[0].mxu0
        %v770 = vpop.f32.mrb[0].mxu0
        %v771 = vadd.f32 0.0, %v770
        %v772 = vpop.f32.mrb[0].mxu0
        %773 = vmatprep.mubr.bf16.mxu0 %v622
        %774 = vmatmul.mubr.bf16.gmra.mrb[0].mxu0 %v502
        %v775 = vpop.f32.mrb[0].mxu0
        %v776 = vadd.f32 0.0, %v775
        %v777 = vpop.f32.mrb[0].mxu0
        %v778 = vpop.f32.mrb[0].mxu0
        %v779 = vadd.f32 0.0, %v778
        %v780 = vpop.f32.mrb[0].mxu0
        %781 = vmatprep.mubr.bf16.mxu0 %v625
        %782 = vmatmul.mubr.bf16.gmra.mrb[0].mxu0 %v504
        %v783 = vpop.f32.mrb[0].mxu0
        %v784 = vadd.f32 0.0, %v783
        %v785 = vpop.f32.mrb[0].mxu0
        %v786 = vpop.f32.mrb[0].mxu0
        %v787 = vadd.f32 0.0, %v786
        %v788 = vpop.f32.mrb[0].mxu0
        %789 = vmatprep.mubr.bf16.mxu0 %v628
        %790 = vmatmul.mubr.bf16.gmra.mrb[0].mxu0 %v506
        %v791 = vpop.f32.mrb[0].mxu0
        %v792 = vadd.f32 0.0, %v791
        %v793 = vpop.f32.mrb[0].mxu0
        %v794 = vpop.f32.mrb[0].mxu0
        %v795 = vadd.f32 0.0, %v794
        %v796 = vpop.f32.mrb[0].mxu0
        %797 = vdwg.mxu0
        %v798 = vadd.f32 %v297, %v672
        %v799 = vadd.f32 %v298, %v675
        %v800 = vadd.f32 %v299, %v680
        %v801 = vadd.f32 %v300, %v683
        %v802 = vadd.f32 %v301, %v688
        %v803 = vadd.f32 %v302, %v691
        %v804 = vadd.f32 %v303, %v696
        %v805 = vadd.f32 %v304, %v699
        %v806 = vadd.f32 %v305, %v704
        %v807 = vadd.f32 %v306, %v707
        %v808 = vadd.f32 %v307, %v712
        %v809 = vadd.f32 %v308, %v715
        %v810 = vadd.f32 %v309, %v720
        %v811 = vadd.f32 %v310, %v723
        %v812 = vadd.f32 %v311, %v728
        %v813 = vadd.f32 %v312, %v731
        %v814 = vadd.f32 %v313, %v736
        %v815 = vadd.f32 %v314, %v739
        %v816 = vadd.f32 %v315, %v744
        %v817 = vadd.f32 %v316, %v747
        %v818 = vadd.f32 %v317, %v752
        %v819 = vadd.f32 %v318, %v755
        %v820 = vadd.f32 %v319, %v760
        %v821 = vadd.f32 %v320, %v763
        %v822 = vadd.f32 %v321, %v768
        %v823 = vadd.f32 %v322, %v771
        %v824 = vadd.f32 %v323, %v776
        %v825 = vadd.f32 %v324, %v779
        %v826 = vadd.f32 %v325, %v784
        %v827 = vadd.f32 %v326, %v787
        %v828 = vadd.f32 %v327, %v792
        %v829 = vadd.f32 %v328, %v795
        %vm830 = vcmask 523264
        %831 = vst.msk [vmem:[#allocation2] sm:$0xff] %vm830, %v798
        %832 = vst.msk [vmem:[#allocation2 + $0x8] sm:$0xff] %vm830, %v799
        %833 = vst.msk [vmem:[#allocation2 + $0x10] sm:$0xff] %vm830, %v800
        %834 = vst.msk [vmem:[#allocation2 + $0x18] sm:$0xff] %vm830, %v801
        %835 = vst.msk [vmem:[#allocation2 + $0x20] sm:$0xff] %vm830, %v802
        %836 = vst.msk [vmem:[#allocation2 + $0x28] sm:$0xff] %vm830, %v803
        %837 = vst.msk [vmem:[#allocation2 + $0x30] sm:$0xff] %vm830, %v804
        %838 = vst.msk [vmem:[#allocation2 + $0x38] sm:$0xff] %vm830, %v805
        %839 = vst.msk [vmem:[#allocation2 + $0x40] sm:$0xff] %vm830, %v806
        %840 = vst.msk [vmem:[#allocation2 + $0x48] sm:$0xff] %vm830, %v807
        %841 = vst.msk [vmem:[#allocation2 + $0x50] sm:$0xff] %vm830, %v808
        %842 = vst.msk [vmem:[#allocation2 + $0x58] sm:$0xff] %vm830, %v809
        %843 = vst.msk [vmem:[#allocation2 + $0x60] sm:$0xff] %vm830, %v810
        %844 = vst.msk [vmem:[#allocation2 + $0x68] sm:$0xff] %vm830, %v811
        %845 = vst.msk [vmem:[#allocation2 + $0x70] sm:$0xff] %vm830, %v812
        %846 = vst.msk [vmem:[#allocation2 + $0x78] sm:$0xff] %vm830, %v813
        %847 = vst.msk [vmem:[#allocation2 + $0x80] sm:$0xff] %vm830, %v814
        %848 = vst.msk [vmem:[#allocation2 + $0x88] sm:$0xff] %vm830, %v815
        %849 = vst.msk [vmem:[#allocation2 + $0x90] sm:$0xff] %vm830, %v816
        %850 = vst.msk [vmem:[#allocation2 + $0x98] sm:$0xff] %vm830, %v817
        %851 = vst.msk [vmem:[#allocation2 + $0xa0] sm:$0xff] %vm830, %v818
        %852 = vst.msk [vmem:[#allocation2 + $0xa8] sm:$0xff] %vm830, %v819
        %853 = vst.msk [vmem:[#allocation2 + $0xb0] sm:$0xff] %vm830, %v820
        %854 = vst.msk [vmem:[#allocation2 + $0xb8] sm:$0xff] %vm830, %v821
        %855 = vst.msk [vmem:[#allocation2 + $0xc0] sm:$0xff] %vm830, %v822
        %856 = vst.msk [vmem:[#allocation2 + $0xc8] sm:$0xff] %vm830, %v823
        %857 = vst.msk [vmem:[#allocation2 + $0xd0] sm:$0xff] %vm830, %v824
        %858 = vst.msk [vmem:[#allocation2 + $0xd8] sm:$0xff] %vm830, %v825
        %859 = vst.msk [vmem:[#allocation2 + $0xe0] sm:$0xff] %vm830, %v826
        %860 = vst.msk [vmem:[#allocation2 + $0xe8] sm:$0xff] %vm830, %v827
        %861 = vst.msk [vmem:[#allocation2 + $0xf0] sm:$0xff] %vm830, %v828
        %862 = vst.msk [vmem:[#allocation2 + $0xf8] sm:$0xff] %vm830, %v829
        // Predicated region
        $region37: #{conv2d_fused.1} parent=31 // pred_check
          %p863 = pneg %p260
        $region38: #{conv2d_fused.1} parent=31 // pred_check_branch
          %865 = sbr.rel (%p863) target = $region40
        $region39: #{conv2d_fused.1} parent=31 // pred_region
          %v866 = vld [vmem:[#allocation2] sm:$0xff]
          %v867 = vld [vmem:[#allocation2 + $0x8] sm:$0xff]
          %v868 = vld [vmem:[#allocation2 + $0x10] sm:$0xff]
          %v869 = vld [vmem:[#allocation2 + $0x18] sm:$0xff]
          %v870 = vld [vmem:[#allocation2 + $0x20] sm:$0xff]
          %v871 = vld [vmem:[#allocation2 + $0x28] sm:$0xff]
          %v872 = vld [vmem:[#allocation2 + $0x30] sm:$0xff]
          %v873 = vld [vmem:[#allocation2 + $0x38] sm:$0xff]
          %v874 = vld [vmem:[#allocation2 + $0x40] sm:$0xff]
          %v875 = vld [vmem:[#allocation2 + $0x48] sm:$0xff]
          %v876 = vld [vmem:[#allocation2 + $0x50] sm:$0xff]
          %v877 = vld [vmem:[#allocation2 + $0x58] sm:$0xff]
          %v878 = vld [vmem:[#allocation2 + $0x60] sm:$0xff]
          %v879 = vld [vmem:[#allocation2 + $0x68] sm:$0xff]
          %v880 = vld [vmem:[#allocation2 + $0x70] sm:$0xff]
          %v881 = vld [vmem:[#allocation2 + $0x78] sm:$0xff]
          %v882 = vld [vmem:[#allocation2 + $0x80] sm:$0xff]
          %v883 = vld [vmem:[#allocation2 + $0x88] sm:$0xff]
          %v884 = vld [vmem:[#allocation2 + $0x90] sm:$0xff]
          %v885 = vld [vmem:[#allocation2 + $0x98] sm:$0xff]
          %v886 = vld [vmem:[#allocation2 + $0xa0] sm:$0xff]
          %v887 = vld [vmem:[#allocation2 + $0xa8] sm:$0xff]
          %v888 = vld [vmem:[#allocation2 + $0xb0] sm:$0xff]
          %v889 = vld [vmem:[#allocation2 + $0xb8] sm:$0xff]
          %v890 = vld [vmem:[#allocation2 + $0xc0] sm:$0xff]
          %v891 = vld [vmem:[#allocation2 + $0xc8] sm:$0xff]
          %v892 = vld [vmem:[#allocation2 + $0xd0] sm:$0xff]
          %v893 = vld [vmem:[#allocation2 + $0xd8] sm:$0xff]
          %v894 = vld [vmem:[#allocation2 + $0xe0] sm:$0xff]
          %v895 = vld [vmem:[#allocation2 + $0xe8] sm:$0xff]
          %v896 = vld [vmem:[#allocation2 + $0xf0] sm:$0xff]
          %v897 = vld [vmem:[#allocation2 + $0xf8] sm:$0xff]
          %v898 = vld [vmem:[%s257] sm:$0x1]
          %v900 = vlaneseq
          %v901 = vshrl.u32 %v900, 7
          %v902 = vsub.s32 0, %v901
          %v903 = vrot.slane %v898, %v902
          %v905 = vadd.f32 %v866, %v903
          %v906 = vadd.f32 %v867, %v903
          %v907 = vadd.f32 %v868, %v903
          %v908 = vadd.f32 %v869, %v903
          %v909 = vadd.f32 %v870, %v903
          %v910 = vadd.f32 %v871, %v903
          %v911 = vadd.f32 %v872, %v903
          %v912 = vadd.f32 %v873, %v903
          %v913 = vadd.f32 %v874, %v903
          %v914 = vadd.f32 %v875, %v903
          %v915 = vadd.f32 %v876, %v903
          %v916 = vadd.f32 %v877, %v903
          %v917 = vadd.f32 %v878, %v903
          %v918 = vadd.f32 %v879, %v903
          %v919 = vadd.f32 %v880, %v903
          %v920 = vadd.f32 %v881, %v903
          %v921 = vadd.f32 %v882, %v903
          %v922 = vadd.f32 %v883, %v903
          %v923 = vadd.f32 %v884, %v903
          %v924 = vadd.f32 %v885, %v903
          %v925 = vadd.f32 %v886, %v903
          %v926 = vadd.f32 %v887, %v903
          %v927 = vadd.f32 %v888, %v903
          %v928 = vadd.f32 %v889, %v903
          %v929 = vadd.f32 %v890, %v903
          %v930 = vadd.f32 %v891, %v903
          %v931 = vadd.f32 %v892, %v903
          %v932 = vadd.f32 %v893, %v903
          %v933 = vadd.f32 %v894, %v903
          %v934 = vadd.f32 %v895, %v903
          %v935 = vadd.f32 %v896, %v903
          %v936 = vadd.f32 %v897, %v903
          %v937 = vmax.f32 %v905, 0.0
          %v938 = vmax.f32 %v906, 0.0
          %v939 = vmax.f32 %v907, 0.0
          %v940 = vmax.f32 %v908, 0.0
          %v941 = vmax.f32 %v909, 0.0
          %v942 = vmax.f32 %v910, 0.0
          %v943 = vmax.f32 %v911, 0.0
          %v944 = vmax.f32 %v912, 0.0
          %v945 = vmax.f32 %v913, 0.0
          %v946 = vmax.f32 %v914, 0.0
          %v947 = vmax.f32 %v915, 0.0
          %v948 = vmax.f32 %v916, 0.0
          %v949 = vmax.f32 %v917, 0.0
          %v950 = vmax.f32 %v918, 0.0
          %v951 = vmax.f32 %v919, 0.0
          %v952 = vmax.f32 %v920, 0.0
          %v953 = vmax.f32 %v921, 0.0
          %v954 = vmax.f32 %v922, 0.0
          %v955 = vmax.f32 %v923, 0.0
          %v956 = vmax.f32 %v924, 0.0
          %v957 = vmax.f32 %v925, 0.0
          %v958 = vmax.f32 %v926, 0.0
          %v959 = vmax.f32 %v927, 0.0
          %v960 = vmax.f32 %v928, 0.0
          %v961 = vmax.f32 %v929, 0.0
          %v962 = vmax.f32 %v930, 0.0
          %v963 = vmax.f32 %v931, 0.0
          %v964 = vmax.f32 %v932, 0.0
          %v965 = vmax.f32 %v933, 0.0
          %v966 = vmax.f32 %v934, 0.0
          %v967 = vmax.f32 %v935, 0.0
          %v968 = vmax.f32 %v936, 0.0
          %v969 = vpack.c.bf16 %v938, %v937
          %v970 = vpack.c.bf16 %v940, %v939
          %v971 = vpack.c.bf16 %v942, %v941
          %v972 = vpack.c.bf16 %v944, %v943
          %v973 = vpack.c.bf16 %v946, %v945
          %v974 = vpack.c.bf16 %v948, %v947
          %v975 = vpack.c.bf16 %v950, %v949
          %v976 = vpack.c.bf16 %v952, %v951
          %v977 = vpack.c.bf16 %v954, %v953
          %v978 = vpack.c.bf16 %v956, %v955
          %v979 = vpack.c.bf16 %v958, %v957
          %v980 = vpack.c.bf16 %v960, %v959
          %v981 = vpack.c.bf16 %v962, %v961
          %v982 = vpack.c.bf16 %v964, %v963
          %v983 = vpack.c.bf16 %v966, %v965
          %v984 = vpack.c.bf16 %v968, %v967
          %v1001 = vunpack.c.l.b16 %v969
          %v1002 = vunpack.c.h.b16 %v969
          %v1003 = vunpack.c.l.b16 %v970
          %v1004 = vunpack.c.h.b16 %v970
          %v1005 = vunpack.c.l.b16 %v971
          %v1006 = vunpack.c.h.b16 %v971
          %v1007 = vunpack.c.l.b16 %v972
          %v1008 = vunpack.c.h.b16 %v972
          %v1009 = vunpack.c.l.b16 %v973
          %v1010 = vunpack.c.h.b16 %v973
          %v1011 = vunpack.c.l.b16 %v974
          %v1012 = vunpack.c.h.b16 %v974
          %v1013 = vunpack.c.l.b16 %v975
          %v1014 = vunpack.c.h.b16 %v975
          %v1015 = vunpack.c.l.b16 %v976
          %v1016 = vunpack.c.h.b16 %v976
          %v1017 = vunpack.c.l.b16 %v977
          %v1018 = vunpack.c.h.b16 %v977
          %v1019 = vunpack.c.l.b16 %v978
          %v1020 = vunpack.c.h.b16 %v978
          %v1021 = vunpack.c.l.b16 %v979
          %v1022 = vunpack.c.h.b16 %v979
          %v1023 = vunpack.c.l.b16 %v980
          %v1024 = vunpack.c.h.b16 %v980
          %v1025 = vunpack.c.l.b16 %v981
          %v1026 = vunpack.c.h.b16 %v981
          %v1027 = vunpack.c.l.b16 %v982
          %v1028 = vunpack.c.h.b16 %v982
          %v1029 = vunpack.c.l.b16 %v983
          %v1030 = vunpack.c.h.b16 %v983
          %v1031 = vunpack.c.l.b16 %v984
          %v1032 = vunpack.c.h.b16 %v984
          %v1033 = vpack.c.b16 %v1001, %v1001
          %v1034 = vpack.c.b16 %v1002, %v1002
          %v1035 = vpack.c.b16 %v1003, %v1003
          %v1036 = vpack.c.b16 %v1004, %v1004
          %v1037 = vpack.c.b16 %v1005, %v1005
          %v1038 = vpack.c.b16 %v1006, %v1006
          %v1039 = vpack.c.b16 %v1007, %v1007
          %v1040 = vpack.c.b16 %v1008, %v1008
          %v1041 = vpack.c.b16 %v1009, %v1009
          %v1042 = vpack.c.b16 %v1010, %v1010
          %v1043 = vpack.c.b16 %v1011, %v1011
          %v1044 = vpack.c.b16 %v1012, %v1012
          %v1045 = vpack.c.b16 %v1013, %v1013
          %v1046 = vpack.c.b16 %v1014, %v1014
          %v1047 = vpack.c.b16 %v1015, %v1015
          %v1048 = vpack.c.b16 %v1016, %v1016
          %v1049 = vpack.c.b16 %v1017, %v1017
          %v1050 = vpack.c.b16 %v1018, %v1018
          %v1051 = vpack.c.b16 %v1019, %v1019
          %v1052 = vpack.c.b16 %v1020, %v1020
          %v1053 = vpack.c.b16 %v1021, %v1021
          %v1054 = vpack.c.b16 %v1022, %v1022
          %v1055 = vpack.c.b16 %v1023, %v1023
          %v1056 = vpack.c.b16 %v1024, %v1024
          %v1057 = vpack.c.b16 %v1025, %v1025
          %v1058 = vpack.c.b16 %v1026, %v1026
          %v1059 = vpack.c.b16 %v1027, %v1027
          %v1060 = vpack.c.b16 %v1028, %v1028
          %v1061 = vpack.c.b16 %v1029, %v1029
          %v1062 = vpack.c.b16 %v1030, %v1030
          %v1063 = vpack.c.b16 %v1031, %v1031
          %v1064 = vpack.c.b16 %v1032, %v1032
          %vm1097 = vcmask 519168
          %1098 = vst.msk [vmem:[%s233] sm:$0xf] %vm1097, %v1033
          %1099 = vst.msk [vmem:[%s233 + $0x4] sm:$0xf] %vm1097, %v1034
          %1100 = vst.msk [vmem:[%s233 + $0x8] sm:$0xf] %vm1097, %v1035
          %1101 = vst.msk [vmem:[%s233 + $0xc] sm:$0xf] %vm1097, %v1036
          %1102 = vst.msk [vmem:[%s233 + $0x10] sm:$0xf] %vm1097, %v1037
          %1103 = vst.msk [vmem:[%s233 + $0x14] sm:$0xf] %vm1097, %v1038
          %1104 = vst.msk [vmem:[%s233 + $0x18] sm:$0xf] %vm1097, %v1039
          %1105 = vst.msk [vmem:[%s233 + $0x1c] sm:$0xf] %vm1097, %v1040
          %1106 = vst.msk [vmem:[%s233 + $0x20] sm:$0xf] %vm1097, %v1041
          %1107 = vst.msk [vmem:[%s233 + $0x24] sm:$0xf] %vm1097, %v1042
          %1108 = vst.msk [vmem:[%s233 + $0x28] sm:$0xf] %vm1097, %v1043
          %1109 = vst.msk [vmem:[%s233 + $0x2c] sm:$0xf] %vm1097, %v1044
          %1110 = vst.msk [vmem:[%s233 + $0x30] sm:$0xf] %vm1097, %v1045
          %1111 = vst.msk [vmem:[%s233 + $0x34] sm:$0xf] %vm1097, %v1046
          %1112 = vst.msk [vmem:[%s233 + $0x38] sm:$0xf] %vm1097, %v1047
          %1113 = vst.msk [vmem:[%s233 + $0x3c] sm:$0xf] %vm1097, %v1048
          %1114 = vst.msk [vmem:[%s233 + $0x40] sm:$0xf] %vm1097, %v1049
          %1115 = vst.msk [vmem:[%s233 + $0x44] sm:$0xf] %vm1097, %v1050
          %1116 = vst.msk [vmem:[%s233 + $0x48] sm:$0xf] %vm1097, %v1051
          %1117 = vst.msk [vmem:[%s233 + $0x4c] sm:$0xf] %vm1097, %v1052
          %1118 = vst.msk [vmem:[%s233 + $0x50] sm:$0xf] %vm1097, %v1053
          %1119 = vst.msk [vmem:[%s233 + $0x54] sm:$0xf] %vm1097, %v1054
          %1120 = vst.msk [vmem:[%s233 + $0x58] sm:$0xf] %vm1097, %v1055
          %1121 = vst.msk [vmem:[%s233 + $0x5c] sm:$0xf] %vm1097, %v1056
          %1122 = vst.msk [vmem:[%s233 + $0x60] sm:$0xf] %vm1097, %v1057
          %1123 = vst.msk [vmem:[%s233 + $0x64] sm:$0xf] %vm1097, %v1058
          %1124 = vst.msk [vmem:[%s233 + $0x68] sm:$0xf] %vm1097, %v1059
          %1125 = vst.msk [vmem:[%s233 + $0x6c] sm:$0xf] %vm1097, %v1060
          %1126 = vst.msk [vmem:[%s233 + $0x70] sm:$0xf] %vm1097, %v1061
          %1127 = vst.msk [vmem:[%s233 + $0x74] sm:$0xf] %vm1097, %v1062
          %1128 = vst.msk [vmem:[%s233 + $0x78] sm:$0xf] %vm1097, %v1063
          %1129 = vst.msk [vmem:[%s233 + $0x7c] sm:$0xf] %vm1097, %v1064
        $region40: #{conv2d_fused.1} parent=31 // pred_fallthru
          _
        %s1130 = sand.u32 %s128, 1
        %s1131 = scalar_lea.sflag [#allocation4], %s1130
        %s1132 = sand.u32 %s128, 1
        %s1133 = smul.addr %s1132, 128
        %s1134 = scalar_lea.vmem [#allocation3], %s1133
        // Predicated region
        $region41: #{conv2d_fused.1} parent=31 // pred_check
          %p1135 = pneg %p138
        $region42: #{conv2d_fused.1} parent=31 // pred_check_branch
          %1137 = sbr.rel (%p1135) target = $region44
        $region43: #{conv2d_fused.1} parent=31 // pred_region
          %s1138 = smul.u32 32, %s22
          %s1140 = ssub.s32 2048, 2048
          %1141 = vsyncadd %s1131, %s1140
          %s1142 = sadd.s32 %s23, %s1138
          %s1143 = smul.addr %s1142, 64
          %s1144 = scalar_lea.hbm %s3, %s1143
          %s1145 = sshll.u32 %s1134, 4
          %s1146 = int_to_ptr.vmem [resolvable:$true] %s1145
          %1151 = dma.vmem_to_hbm [thread:$0]  %s1146, 2048, %s1144, %s1131, 64, 64, 4
        $region44: #{conv2d_fused.1} parent=31 // pred_fallthru
          _
      $region32: #{conv2d_fused.1} parent=5 // pred_fallthru
        _
      %p1152 = scmp.le.s32.totalorder 2, %s12
      // Predicated region
      $region45: #{conv2d_fused.1} parent=5 // pred_check
        %p1153 = pneg %p1152
      $region46: #{conv2d_fused.1} parent=5 // pred_check_branch
        %1155 = sbr.rel (%p1153) target = $region48
      $region47: #{conv2d_fused.1} parent=5 // pred_region
        %s1156 = ssub.s32 %s12, 2
        // Predicated region
        $region49: #{conv2d_fused.1} parent=47 // pred_check
          %p1157 = pneg %p144
        $region50: #{conv2d_fused.1} parent=47 // pred_check_branch
          %1159 = sbr.rel (%p1157) target = $region52
        $region51: #{conv2d_fused.1} parent=47 // pred_region
          %s1160 = sand.u32 %s129, 1
          %s1161 = scalar_lea.sflag [#allocation4], %s1160
          %s1162 = sand.u32 %s129, 1
          %s1163 = smul.addr %s1162, 128
          %s1164 = scalar_lea.vmem [#allocation3], %s1163
          %1165 = dma.done %s1161, 2048
        $region52: #{conv2d_fused.1} parent=47 // pred_fallthru
          _
      $region48: #{conv2d_fused.1} parent=5 // pred_fallthru
        _
    $region6: #{conv2d_fused.1} parent=1 // loop_footer
      %s16 = sadd.s32 1, %s12
    $region7: #{conv2d_fused.1} parent=1 // loop_footer_branch
      %11 = sbr.rel target = $region3
    $region8: #{conv2d_fused.1} parent=1 // loop_exit
      _
    %1166 = vsyncpa [#allocation4], 1
    %s1167 = scalar_lea.sflag [#allocation4], 1
    %1168 = vsyncpa %s1167, 1

</llo_original>
